<compile_context>
chip_gen: v6e
topology: v6e:2x2x1
jax: 0.10.0
libtpu: 0.0.40
codegen_flags: <defaults>
</compile_context>

<pallas_src>
import functools

import jax
import jax.numpy as jnp
from jax.experimental import pallas as pl
from jax.experimental.pallas import tpu as pltpu


def _round_up(n, m):
    return ((n + m - 1) // m) * m


def _block_spec(shape, index_map, buffers=None):
    """BlockSpec with an optional explicit pipeline buffer count.

    Falls back to the default (double-buffered) spec if this jax version does
    not accept pipeline_mode / pl.Buffered.
    """
    if buffers is None:
        return pl.BlockSpec(shape, index_map)
    try:
        return pl.BlockSpec(shape, index_map, pipeline_mode=pl.Buffered(buffers))
    except (TypeError, AttributeError):
        return pl.BlockSpec(shape, index_map)


def _ae_kernel(x_ref, w1_ref, b1_ref, w2_ref, b2_ref,
               w3_ref, b3_ref, w4_ref, b4_ref,
               enc_ref, dec_ref, *, compute_dtype):
    cd = compute_dtype
    x = x_ref[...].astype(cd)                                   # (TB, Dp)

    # ---- encoder ----
    h1 = jnp.dot(x, w1_ref[...],
                 preferred_element_type=jnp.float32) + b1_ref[...]
    h1 = jnp.maximum(h1, 0.0)                                   # ReLU, (TB, H)

    enc = jnp.dot(h1.astype(cd), w2_ref[...],
                  preferred_element_type=jnp.float32) + b2_ref[...]
    enc = jnp.maximum(enc, 0.0)                                 # ReLU, (TB, Zp); pad cols stay 0

    # ---- decoder ----
    h3 = jnp.dot(enc.astype(cd), w3_ref[...],
                 preferred_element_type=jnp.float32) + b3_ref[...]
    h3 = jnp.maximum(h3, 0.0)                                   # ReLU, (TB, H)

    logits = jnp.dot(h3.astype(cd), w4_ref[...],
                     preferred_element_type=jnp.float32) + b4_ref[...]
    # sigmoid(x) == 0.5*(tanh(0.5*x)+1): tanh runs on the EUP, no VPU divide.
    dec = 0.5 * (jnp.tanh(0.5 * logits) + 1.0)                  # (TB, Dp)

    enc_ref[...] = enc.astype(enc_ref.dtype)
    dec_ref[...] = dec.astype(dec_ref.dtype)


def prepare_params(params, *, use_bf16=True):
    """One-time weight prep (do NOT call per forward step).

    Pads the 32-wide bottleneck to a lane-dense 128 and the feature dim D to a
    multiple of 128 (all pads are zeros, so results are exact), and casts the
    matmul operands to the compute dtype once.
    """
    w1, b1, w2, b2, w3, b3, w4, b4 = params
    D, H = w1.shape
    Z = w2.shape[1]
    cd = jnp.bfloat16 if use_bf16 else jnp.float32
    Dp = _round_up(D, 128)
    # Keep Zp at 128: enc@W3 FLOPs are negligible; padding further just wastes MXU work.
    Zp = max(128, _round_up(Z, 128))

    w1p = jnp.pad(w1, ((0, Dp - D), (0, 0))).astype(cd)   # zero rows x zero cols of x -> exact
    w2p = jnp.pad(w2, ((0, 0), (0, Zp - Z))).astype(cd)
    b2p = jnp.pad(b2, ((0, 0), (0, Zp - Z)))
    w3p = jnp.pad(w3, ((0, Zp - Z), (0, 0))).astype(cd)
    w4p = jnp.pad(w4, ((0, 0), (0, Dp - D))).astype(cd)
    b4p = jnp.pad(b4, ((0, 0), (0, Dp - D)))
    return (w1p, b1, w2p, b2p, w3p, b3, w4p, b4p)


@functools.partial(jax.jit, static_argnames=("z_dim", "tile_b", "out_dtype"))
def autoencoder_forward(x, prepped, *, z_dim=32, tile_b=512, out_dtype=jnp.float32):
    """Returns (encoded, decoded), matching the PyTorch module's forward.

    `prepped` must come from prepare_params(); `z_dim` is the original
    bottleneck width (32 for this module).
    """
    B, D = x.shape
    w1p, b1p, w2p, b2p, w3p, b3p, w4p, b4p = prepped
    Dp, H = w1p.shape
    Zp = w2p.shape[1]
    cd = w1p.dtype

    # --- batch tile: as large as possible (default 512), but split into >= 2 grid
    # steps when the batch allows so the "parallel" axis can use both v7x TCs.
    # 16-aligned so bf16 sublane pairs stay regular (8 if compute dtype is f32).
    align = 16 if cd == jnp.dtype(jnp.bfloat16) else 8
    half = _round_up(-(-B // 2), align)            # ceil(B/2), aligned
    tb = max(align, min(tile_b, half))
    B_pad = _round_up(B, tb)
    grid = B_pad // tb

    # --- pad batch rows and feature columns (exact: pads are zero; sliced off below)
    xp = x
    if B_pad != B or Dp != D:
        xp = jnp.pad(x, ((0, B_pad - B), (0, Dp - D)))

    cd_isz = jnp.dtype(cd).itemsize
    out_isz = jnp.dtype(out_dtype).itemsize
    x_isz = jnp.dtype(x.dtype).itemsize

    # --- VMEM budget computed from actual tile sizes; kept well under v7x's 64 MiB.
    w_bytes = (Dp * H + H * Zp + Zp * H + H * Dp) * cd_isz + (2 * H + Zp + Dp) * 4
    x_bytes = tb * Dp * x_isz * 2                   # double-buffered input tile
    o_bytes = tb * (Zp + Dp) * out_isz * 2          # double-buffered output tiles
    i_bytes = tb * (2 * H + Zp + 2 * Dp) * 4        # in-kernel f32 intermediates
    vmem_limit = int(min(40 << 20,
                         max(16 << 20, 2 * (w_bytes + x_bytes + o_bytes + i_bytes))))

    cost = pl.CostEstimate(
        flops=2 * B_pad * (Dp * H + H * Zp + Zp * H + H * Dp),
        transcendentals=B_pad * Dp,
        bytes_accessed=B_pad * Dp * x_isz + w_bytes + B_pad * (Zp + Dp) * out_isz,
    )

    batch = lambda shape: _block_spec(shape, lambda i: (i, 0))
    # Grid-invariant weights/biases: single pipeline buffer (no wasted VMEM copy).
    weight = lambda shape: _block_spec(shape, lambda i: (0,) * len(shape), buffers=1)

    enc_p, dec_p = pl.pallas_call(
        functools.partial(_ae_kernel, compute_dtype=cd),
        out_shape=(
            jax.ShapeDtypeStruct((B_pad, Zp), out_dtype),
            jax.ShapeDtypeStruct((B_pad, Dp), out_dtype),
        ),
        grid_spec=pltpu.PrefetchScalarGridSpec(
            num_scalar_prefetch=0,
            grid=(grid,),
            in_specs=[
                batch((tb, Dp)),                    # x
                weight((Dp, H)), weight((1, H)),    # layer 1
                weight((H, Zp)), weight((1, Zp)),   # layer 2 (Z padded to 128)
                weight((Zp, H)), weight((1, H)),    # layer 3 (padded rows)
                weight((H, Dp)), weight((1, Dp)),   # layer 4 (D padded)
            ],
            out_specs=[
                batch((tb, Zp)),                    # encoded (lane-dense)
                batch((tb, Dp)),                    # decoded (lane-dense)
            ],
        ),
        compiler_params=pltpu.CompilerParams(
            dimension_semantics=("parallel",),
            vmem_limit_bytes=vmem_limit,
        ),
        cost_estimate=cost,
    )(xp, w1p, b1p, w2p, b2p, w3p, b3p, w4p, b4p)

    return enc_p[:B, :z_dim], dec_p[:B, :D]


def init_params(key, image_size1, image_size2):
    """Deterministic init mirroring nn.Linear's U(-1/sqrt(fan_in), +1/sqrt(fan_in))."""
    D = image_size1 * image_size2
    dims = [(D, 512), (512, 32), (32, 512), (512, D)]
    params = []
    for (fan_in, fan_out) in dims:
        key, kw, kb = jax.random.split(key, 3)
        bound = 1.0 / jnp.sqrt(fan_in)
        w = jax.random.uniform(kw, (fan_in, fan_out), jnp.float32, -bound, bound)
        b = jax.random.uniform(kb, (1, fan_out), jnp.float32, -bound, bound)
        params.extend([w, b])
    return tuple(params)


def reference_forward(x, params, use_bf16=True):
    """Pure-JAX reference on the ORIGINAL (unpadded, f32) params.
    With use_bf16=True it mimics the kernel's bf16 operand casts."""
    cd = jnp.bfloat16 if use_bf16 else jnp.float32
    w1, b1, w2, b2, w3, b3, w4, b4 = params
    dot = lambda a, w: jnp.dot(a.astype(cd), w.astype(cd),
                               preferred_element_type=jnp.float32)
    h1 = jax.nn.relu(dot(x, w1) + b1)
    enc = jax.nn.relu(dot(h1, w2) + b2)
    h3 = jax.nn.relu(dot(enc, w3) + b3)
    dec = jax.nn.sigmoid(dot(h3, w4) + b4)
    return enc, dec


if __name__ == "__main__":
    root_key = jax.random.PRNGKey(0)

    def run_case(image_size1, image_size2, B, tile_b=512):
        D = image_size1 * image_size2
        case_key = jax.random.fold_in(root_key, D * 1000 + B)
        kx, kp = jax.random.split(case_key)
        x = jax.random.uniform(kx, (B, D), jnp.float32)
        params = init_params(kp, image_size1, image_size2)

        # one-time weight prep, off the per-call hot path
        prepped = jax.block_until_ready(prepare_params(params, use_bf16=True))

        enc, dec = autoencoder_forward(x, prepped, z_dim=32, tile_b=tile_b)
        jax.block_until_ready((enc, dec))
        assert enc.shape == (B, 32) and dec.shape == (B, D)

        # exact-path check against a reference with matching bf16 operand casts
        enc_ref, dec_ref = reference_forward(x, params, use_bf16=True)
        assert jnp.allclose(enc, enc_ref, atol=2e-3, rtol=2e-3)
        assert jnp.allclose(dec, dec_ref, atol=2e-3, rtol=2e-3)

        # loose check against full-f32 PyTorch-equivalent math
        enc_f32, dec_f32 = reference_forward(x, params, use_bf16=False)
        assert jnp.allclose(enc, enc_f32, atol=5e-2, rtol=5e-2)
        assert jnp.allclose(dec, dec_f32, atol=5e-2, rtol=5e-2)

    # D = 256 (16x16): batch not tile-aligned -> batch padding + 2-step parallel grid
    run_case(16, 16, 200)
    # D = 784 (28x28): exercises lane-padding of D to 896 (lane-dense stores)
    run_case(28, 28, 64)

    print("KERNEL_OK")
</pallas_src>

<mosaic_0001>
module attributes {stable_mosaic.version = 11 : i64} {
  func.func @_ae_kernel(%arg0: i32, %arg1: memref<112x256xf32, #tpu.memory_space<vmem>>, %arg2: memref<256x512xbf16, #tpu.memory_space<vmem>>, %arg3: memref<1x512xf32, #tpu.memory_space<vmem>>, %arg4: memref<512x128xbf16, #tpu.memory_space<vmem>>, %arg5: memref<1x128xf32, #tpu.memory_space<vmem>>, %arg6: memref<128x512xbf16, #tpu.memory_space<vmem>>, %arg7: memref<1x512xf32, #tpu.memory_space<vmem>>, %arg8: memref<512x256xbf16, #tpu.memory_space<vmem>>, %arg9: memref<1x256xf32, #tpu.memory_space<vmem>>, %arg10: memref<112x128xf32, #tpu.memory_space<vmem>>, %arg11: memref<112x256xf32, #tpu.memory_space<vmem>>) attributes {dimension_semantics = [#tpu.dimension_semantics<parallel>], iteration_bounds = array<i64: 2>, scalar_prefetch = 0 : i64, scratch_operands = 0 : i64, tpu.core_type = #tpu.core_type<tc>, window_params = [{transform_indices = @transform_0, window_bounds = array<i64: 112, 256>}, {pipeline_mode = #tpu.pipeline_mode<synchronous>, transform_indices = @transform_1, window_bounds = array<i64: 256, 512>}, {pipeline_mode = #tpu.pipeline_mode<synchronous>, transform_indices = @transform_2, window_bounds = array<i64: 1, 512>}, {pipeline_mode = #tpu.pipeline_mode<synchronous>, transform_indices = @transform_3, window_bounds = array<i64: 512, 128>}, {pipeline_mode = #tpu.pipeline_mode<synchronous>, transform_indices = @transform_4, window_bounds = array<i64: 1, 128>}, {pipeline_mode = #tpu.pipeline_mode<synchronous>, transform_indices = @transform_5, window_bounds = array<i64: 128, 512>}, {pipeline_mode = #tpu.pipeline_mode<synchronous>, transform_indices = @transform_6, window_bounds = array<i64: 1, 512>}, {pipeline_mode = #tpu.pipeline_mode<synchronous>, transform_indices = @transform_7, window_bounds = array<i64: 512, 256>}, {pipeline_mode = #tpu.pipeline_mode<synchronous>, transform_indices = @transform_8, window_bounds = array<i64: 1, 256>}, {transform_indices = @transform_9, window_bounds = array<i64: 112, 128>}, {transform_indices = @transform_10, window_bounds = array<i64: 112, 256>}]} {
    %c0 = arith.constant 0 : index
    %c0_0 = arith.constant 0 : index
    %0 = vector.load %arg1[%c0, %c0_0] : memref<112x256xf32, #tpu.memory_space<vmem>>, vector<112x256xf32>
    %1 = arith.truncf %0 : vector<112x256xf32> to vector<112x256xbf16>
    %c0_1 = arith.constant 0 : index
    %c0_2 = arith.constant 0 : index
    %2 = vector.load %arg2[%c0_1, %c0_2] : memref<256x512xbf16, #tpu.memory_space<vmem>>, vector<256x512xbf16>
    %cst = arith.constant dense<0.000000e+00> : vector<112x512xf32>
    %3 = tpu.matmul %1, %2, %cst {dimension_numbers = #tpu.dot_dimension_numbers<[1], [0], [0], [1], [0, 0, 1, 1], [], []>} : vector<112x256xbf16>, vector<256x512xbf16>, vector<112x512xf32> -> vector<112x512xf32>
    %c0_3 = arith.constant 0 : index
    %c0_4 = arith.constant 0 : index
    %4 = vector.load %arg3[%c0_3, %c0_4] : memref<1x512xf32, #tpu.memory_space<vmem>>, vector<1x512xf32>
    %5 = vector.broadcast %4 : vector<1x512xf32> to vector<112x512xf32>
    %6 = arith.addf %3, %5 : vector<112x512xf32>
    %cst_5 = arith.constant 0.000000e+00 : f32
    %7 = vector.broadcast %cst_5 : f32 to vector<112x512xf32>
    %8 = arith.maximumf %6, %7 : vector<112x512xf32>
    %9 = arith.truncf %8 : vector<112x512xf32> to vector<112x512xbf16>
    %c0_6 = arith.constant 0 : index
    %c0_7 = arith.constant 0 : index
    %10 = vector.load %arg4[%c0_6, %c0_7] : memref<512x128xbf16, #tpu.memory_space<vmem>>, vector<512x128xbf16>
    %cst_8 = arith.constant dense<0.000000e+00> : vector<112x128xf32>
    %11 = tpu.matmul %9, %10, %cst_8 {dimension_numbers = #tpu.dot_dimension_numbers<[1], [0], [0], [1], [0, 0, 1, 1], [], []>} : vector<112x512xbf16>, vector<512x128xbf16>, vector<112x128xf32> -> vector<112x128xf32>
    %c0_9 = arith.constant 0 : index
    %c0_10 = arith.constant 0 : index
    %12 = vector.load %arg5[%c0_9, %c0_10] : memref<1x128xf32, #tpu.memory_space<vmem>>, vector<1x128xf32>
    %13 = vector.broadcast %12 : vector<1x128xf32> to vector<112x128xf32>
    %14 = arith.addf %11, %13 : vector<112x128xf32>
    %cst_11 = arith.constant 0.000000e+00 : f32
    %15 = vector.broadcast %cst_11 : f32 to vector<112x128xf32>
    %16 = arith.maximumf %14, %15 : vector<112x128xf32>
    %17 = arith.truncf %16 : vector<112x128xf32> to vector<112x128xbf16>
    %c0_12 = arith.constant 0 : index
    %c0_13 = arith.constant 0 : index
    %18 = vector.load %arg6[%c0_12, %c0_13] : memref<128x512xbf16, #tpu.memory_space<vmem>>, vector<128x512xbf16>
    %cst_14 = arith.constant dense<0.000000e+00> : vector<112x512xf32>
    %19 = tpu.matmul %17, %18, %cst_14 {dimension_numbers = #tpu.dot_dimension_numbers<[1], [0], [0], [1], [0, 0, 1, 1], [], []>} : vector<112x128xbf16>, vector<128x512xbf16>, vector<112x512xf32> -> vector<112x512xf32>
    %c0_15 = arith.constant 0 : index
    %c0_16 = arith.constant 0 : index
    %20 = vector.load %arg7[%c0_15, %c0_16] : memref<1x512xf32, #tpu.memory_space<vmem>>, vector<1x512xf32>
    %21 = vector.broadcast %20 : vector<1x512xf32> to vector<112x512xf32>
    %22 = arith.addf %19, %21 : vector<112x512xf32>
    %cst_17 = arith.constant 0.000000e+00 : f32
    %23 = vector.broadcast %cst_17 : f32 to vector<112x512xf32>
    %24 = arith.maximumf %22, %23 : vector<112x512xf32>
    %25 = arith.truncf %24 : vector<112x512xf32> to vector<112x512xbf16>
    %c0_18 = arith.constant 0 : index
    %c0_19 = arith.constant 0 : index
    %26 = vector.load %arg8[%c0_18, %c0_19] : memref<512x256xbf16, #tpu.memory_space<vmem>>, vector<512x256xbf16>
    %cst_20 = arith.constant dense<0.000000e+00> : vector<112x256xf32>
    %27 = tpu.matmul %25, %26, %cst_20 {dimension_numbers = #tpu.dot_dimension_numbers<[1], [0], [0], [1], [0, 0, 1, 1], [], []>} : vector<112x512xbf16>, vector<512x256xbf16>, vector<112x256xf32> -> vector<112x256xf32>
    %c0_21 = arith.constant 0 : index
    %c0_22 = arith.constant 0 : index
    %28 = vector.load %arg9[%c0_21, %c0_22] : memref<1x256xf32, #tpu.memory_space<vmem>>, vector<1x256xf32>
    %29 = vector.broadcast %28 : vector<1x256xf32> to vector<112x256xf32>
    %30 = arith.addf %27, %29 : vector<112x256xf32>
    %cst_23 = arith.constant 5.000000e-01 : f32
    %31 = vector.broadcast %cst_23 : f32 to vector<112x256xf32>
    %32 = arith.mulf %31, %30 : vector<112x256xf32>
    %33 = math.tanh %32 : vector<112x256xf32>
    %cst_24 = arith.constant 1.000000e+00 : f32
    %34 = vector.broadcast %cst_24 : f32 to vector<112x256xf32>
    %35 = arith.addf %33, %34 : vector<112x256xf32>
    %cst_25 = arith.constant 5.000000e-01 : f32
    %36 = vector.broadcast %cst_25 : f32 to vector<112x256xf32>
    %37 = arith.mulf %36, %35 : vector<112x256xf32>
    %c0_26 = arith.constant 0 : index
    %c0_27 = arith.constant 0 : index
    %38 = vector.load %arg10[%c0_26, %c0_27] : memref<112x128xf32, #tpu.memory_space<vmem>>, vector<112x128xf32>
    tpu.vector_store %arg10[%c0_26, %c0_27], %16 {strides = array<i32>} : memref<112x128xf32, #tpu.memory_space<vmem>>, vector<112x128xf32>,
    %c0_28 = arith.constant 0 : index
    %c0_29 = arith.constant 0 : index
    %39 = vector.load %arg11[%c0_28, %c0_29] : memref<112x256xf32, #tpu.memory_space<vmem>>, vector<112x256xf32>
    tpu.vector_store %arg11[%c0_28, %c0_29], %37 {strides = array<i32>} : memref<112x256xf32, #tpu.memory_space<vmem>>, vector<112x256xf32>,
    return
  }
  func.func @transform_0(%arg0: i32) -> (i32, i32) {
    %c0_i32 = arith.constant 0 : i32
    %c0_i32_0 = arith.constant 0 : i32
    return %arg0, %c0_i32 : i32, i32
  }
  func.func @transform_1(%arg0: i32) -> (i32, i32) {
    %c0_i32 = arith.constant 0 : i32
    %c0_i32_0 = arith.constant 0 : i32
    %c0_i32_1 = arith.constant 0 : i32
    return %c0_i32, %c0_i32_0 : i32, i32
  }
  func.func @transform_2(%arg0: i32) -> (i32, i32) {
    %c0_i32 = arith.constant 0 : i32
    %c0_i32_0 = arith.constant 0 : i32
    %c0_i32_1 = arith.constant 0 : i32
    return %c0_i32, %c0_i32_0 : i32, i32
  }
  func.func @transform_3(%arg0: i32) -> (i32, i32) {
    %c0_i32 = arith.constant 0 : i32
    %c0_i32_0 = arith.constant 0 : i32
    %c0_i32_1 = arith.constant 0 : i32
    return %c0_i32, %c0_i32_0 : i32, i32
  }
  func.func @transform_4(%arg0: i32) -> (i32, i32) {
    %c0_i32 = arith.constant 0 : i32
    %c0_i32_0 = arith.constant 0 : i32
    %c0_i32_1 = arith.constant 0 : i32
    return %c0_i32, %c0_i32_0 : i32, i32
  }
  func.func @transform_5(%arg0: i32) -> (i32, i32) {
    %c0_i32 = arith.constant 0 : i32
    %c0_i32_0 = arith.constant 0 : i32
    %c0_i32_1 = arith.constant 0 : i32
    return %c0_i32, %c0_i32_0 : i32, i32
  }
  func.func @transform_6(%arg0: i32) -> (i32, i32) {
    %c0_i32 = arith.constant 0 : i32
    %c0_i32_0 = arith.constant 0 : i32
    %c0_i32_1 = arith.constant 0 : i32
    return %c0_i32, %c0_i32_0 : i32, i32
  }
  func.func @transform_7(%arg0: i32) -> (i32, i32) {
    %c0_i32 = arith.constant 0 : i32
    %c0_i32_0 = arith.constant 0 : i32
    %c0_i32_1 = arith.constant 0 : i32
    return %c0_i32, %c0_i32_0 : i32, i32
  }
  func.func @transform_8(%arg0: i32) -> (i32, i32) {
    %c0_i32 = arith.constant 0 : i32
    %c0_i32_0 = arith.constant 0 : i32
    %c0_i32_1 = arith.constant 0 : i32
    return %c0_i32, %c0_i32_0 : i32, i32
  }
  func.func @transform_9(%arg0: i32) -> (i32, i32) {
    %c0_i32 = arith.constant 0 : i32
    %c0_i32_0 = arith.constant 0 : i32
    return %arg0, %c0_i32 : i32, i32
  }
  func.func @transform_10(%arg0: i32) -> (i32, i32) {
    %c0_i32 = arith.constant 0 : i32
    %c0_i32_0 = arith.constant 0 : i32
    return %arg0, %c0_i32 : i32, i32
  }
}

</mosaic_0001>

<llo_original>
// kernel: autoencoder_forward.1
$region0: #{autoencoder_forward.1}
  #allocation0 [shape = 'u32[]', space=smem, size = 0x4, offset = 0x4, fixed_abs, tag = 'smem constant byte address 0x4 - core index']
  #allocation1 [shape = 'u32[144,128]{1,0:T(1,128)}', space=vmem, size = 0x12000, scoped, tag = 'internal scratch']
  %s0 = inlined_call_operand.vmem [shape: f32[224,256], index: 0, kind: input, shape index: {}]
  %s1 = inlined_call_operand.vmem [shape: bf16[256,512], index: 1, kind: input, shape index: {}]
  %s2 = inlined_call_operand.vmem [shape: f32[1,512], index: 2, kind: input, shape index: {}]
  %s3 = inlined_call_operand.vmem [shape: bf16[512,128], index: 3, kind: input, shape index: {}]
  %s4 = inlined_call_operand.vmem [shape: f32[1,128], index: 4, kind: input, shape index: {}]
  %s5 = inlined_call_operand.hbm [shape: bf16[128,512], index: 5, kind: input, shape index: {}]
  %s6 = inlined_call_operand.vmem [shape: f32[1,512], index: 6, kind: input, shape index: {}]
  %s7 = inlined_call_operand.hbm [shape: bf16[512,256], index: 7, kind: input, shape index: {}]
  %s8 = inlined_call_operand.vmem [shape: f32[1,256], index: 8, kind: input, shape index: {}]
  %s9 = inlined_call_operand.vmem [shape: f32[224,128], index: 9, kind: output, shape index: {0}]
  %s10 = inlined_call_operand.vmem [shape: f32[224,256], index: 10, kind: output, shape index: {1}]
  %11 = xla_tuple %s9, %s10
  %s12 = sld [smem:[#allocation0]]
  $region85: #{autoencoder_forward.1} parent=0
    _
  %s14 = ssub.s32 1, %s12
  %s15 = scalar_select 0, %s14, %s12
  $region1: #{autoencoder_forward.1} parent=0
    #allocation2 [shape = 'u8[131072]{0}', space=vmem, size = 0x20000, scoped, tag = 'input window, operand 5, single buffered']
    #allocation3 [shape = 's32[2]{0}', space=sflag, size = 0x8, scoped, tag = 'scoped memory for autoencoder_forward.1']
    #allocation4 [shape = 'u8[262144]{0}', space=vmem, size = 0x40000, scoped, tag = 'input window, operand 7, single buffered']
    #allocation5 [shape = 's32[1]{0}', space=sflag, size = 0x4, scoped, tag = 'scoped memory for autoencoder_forward.1']
    %16 = vsyncpa [#allocation3], 0
    %17 = vsyncpa [#allocation5], 0
    loop: start=0, step=1, limit=4
    $region2: #{autoencoder_forward.1} parent=1 // loop_pre_header
      _
    $region3: #{autoencoder_forward.1} parent=1 // loop_header
      %s19 = sphi 0, %s23
      %p20 = scmp.ge.s32.totalorder %s19, 4
      %s29 = sphi 0, %s31
      %s32 = sphi 0, %s29
      %s33 = sphi 0, %s32
      %s49 = sphi 0, %s33
      %s53 = sphi 0, %s53
      %s55 = sphi 0, %s53
      %s56 = sphi 0, %s55
      %s70 = sphi 0, %s56
      %s74 = sphi 0, %s74
      %s76 = sphi 0, %s74
      %s77 = sphi 0, %s76
      %s91 = sphi 0, %s77
      %s95 = sphi 0, %s95
      %s97 = sphi 0, %s95
      %s98 = sphi 0, %s97
      %s112 = sphi 0, %s98
      %s116 = sphi 0, %s116
      %s118 = sphi 0, %s116
      %s119 = sphi 0, %s118
      %s133 = sphi 0, %s119
      %s137 = sphi 0, %s137
      %s139 = sphi 0, %s137
      %s140 = sphi 0, %s139
      %s154 = sphi 0, %s140
      %s158 = sphi 0, %s158
      %s160 = sphi 0, %s158
      %s161 = sphi 0, %s160
      %s175 = sphi 0, %s161
      %s179 = sphi 0, %s179
      %s181 = sphi 0, %s179
      %s182 = sphi 0, %s181
      %s196 = sphi 0, %s182
      %s200 = sphi 0, %s200
      %s202 = sphi 0, %s200
      %s203 = sphi 0, %s202
      %s217 = sphi 0, %s203
      %s223 = sphi 0, %s225
      %s226 = sphi 0, %s223
      %s227 = sphi 0, %s226
      %s243 = sphi 0, %s227
      %s249 = sphi 0, %s251
      %s252 = sphi 0, %s249
      %s253 = sphi 0, %s252
      %s269 = sphi 0, %s253
    $region4: #{autoencoder_forward.1} parent=1 // loop_header_branch
      %22 = sbr.rel (%p20) target = $region8
    $region5: #{autoencoder_forward.1} parent=1 // loop_body
      %s24 = ssub.s32 %s19, 1
      %s25 = ssub.s32 %s19, 2
      %s26 = sadd.s32 %s19, 1
      %s27 = ssub.s32 %s19, %s26
      %p28 = scmp.eq.s32.totalorder %s27, 0
      %s30 = sadd.s32 %s29, 1
      %s31 = scalar_select %p28, %s29, %s30
      %p34 = pneg %p28
      %p35 = scmp.eq.s32.totalorder %s19, 1
      %p36 = por %p34, %p35
      %p37 = scmp.ne.s32.totalorder %s29, %s32
      %p38 = scmp.eq.s32.totalorder %s19, 0
      %p39 = por %p37, %p38
      %p40 = scmp.ne.s32.totalorder %s29, %s32
      %p41 = scmp.eq.s32.totalorder %s24, 1
      %p42 = por %p40, %p41
      %p43 = scmp.ne.s32.totalorder %s32, %s33
      %p44 = scmp.eq.s32.totalorder %s24, 0
      %p45 = por %p43, %p44
      %p46 = scmp.ne.s32.totalorder %s32, %s33
      %p47 = scmp.eq.s32.totalorder %s25, 1
      %p48 = por %p46, %p47
      %p50 = scmp.ne.s32.totalorder %s33, %s49
      %p51 = scmp.eq.s32.totalorder %s25, 0
      %p52 = por %p50, %p51
      %s54 = sadd.s32 %s53, 1
      %p57 = scmp.eq.s32.totalorder %s19, 1
      %p58 = scmp.ne.s32.totalorder %s53, %s55
      %p59 = scmp.eq.s32.totalorder %s19, 0
      %p60 = por %p58, %p59
      %p61 = scmp.ne.s32.totalorder %s53, %s55
      %p62 = scmp.eq.s32.totalorder %s24, 1
      %p63 = por %p61, %p62
      %p64 = scmp.ne.s32.totalorder %s55, %s56
      %p65 = scmp.eq.s32.totalorder %s24, 0
      %p66 = por %p64, %p65
      %p67 = scmp.ne.s32.totalorder %s55, %s56
      %p68 = scmp.eq.s32.totalorder %s25, 1
      %p69 = por %p67, %p68
      %p71 = scmp.ne.s32.totalorder %s56, %s70
      %p72 = scmp.eq.s32.totalorder %s25, 0
      %p73 = por %p71, %p72
      %s75 = sadd.s32 %s74, 1
      %p78 = scmp.eq.s32.totalorder %s19, 1
      %p79 = scmp.ne.s32.totalorder %s74, %s76
      %p80 = scmp.eq.s32.totalorder %s19, 0
      %p81 = por %p79, %p80
      %p82 = scmp.ne.s32.totalorder %s74, %s76
      %p83 = scmp.eq.s32.totalorder %s24, 1
      %p84 = por %p82, %p83
      %p85 = scmp.ne.s32.totalorder %s76, %s77
      %p86 = scmp.eq.s32.totalorder %s24, 0
      %p87 = por %p85, %p86
      %p88 = scmp.ne.s32.totalorder %s76, %s77
      %p89 = scmp.eq.s32.totalorder %s25, 1
      %p90 = por %p88, %p89
      %p92 = scmp.ne.s32.totalorder %s77, %s91
      %p93 = scmp.eq.s32.totalorder %s25, 0
      %p94 = por %p92, %p93
      %s96 = sadd.s32 %s95, 1
      %p99 = scmp.eq.s32.totalorder %s19, 1
      %p100 = scmp.ne.s32.totalorder %s95, %s97
      %p101 = scmp.eq.s32.totalorder %s19, 0
      %p102 = por %p100, %p101
      %p103 = scmp.ne.s32.totalorder %s95, %s97
      %p104 = scmp.eq.s32.totalorder %s24, 1
      %p105 = por %p103, %p104
      %p106 = scmp.ne.s32.totalorder %s97, %s98
      %p107 = scmp.eq.s32.totalorder %s24, 0
      %p108 = por %p106, %p107
      %p109 = scmp.ne.s32.totalorder %s97, %s98
      %p110 = scmp.eq.s32.totalorder %s25, 1
      %p111 = por %p109, %p110
      %p113 = scmp.ne.s32.totalorder %s98, %s112
      %p114 = scmp.eq.s32.totalorder %s25, 0
      %p115 = por %p113, %p114
      %s117 = sadd.s32 %s116, 1
      %p120 = scmp.eq.s32.totalorder %s19, 1
      %p121 = scmp.ne.s32.totalorder %s116, %s118
      %p122 = scmp.eq.s32.totalorder %s19, 0
      %p123 = por %p121, %p122
      %p124 = scmp.ne.s32.totalorder %s116, %s118
      %p125 = scmp.eq.s32.totalorder %s24, 1
      %p126 = por %p124, %p125
      %p127 = scmp.ne.s32.totalorder %s118, %s119
      %p128 = scmp.eq.s32.totalorder %s24, 0
      %p129 = por %p127, %p128
      %p130 = scmp.ne.s32.totalorder %s118, %s119
      %p131 = scmp.eq.s32.totalorder %s25, 1
      %p132 = por %p130, %p131
      %p134 = scmp.ne.s32.totalorder %s119, %s133
      %p135 = scmp.eq.s32.totalorder %s25, 0
      %p136 = por %p134, %p135
      %s138 = sadd.s32 %s137, 1
      %p141 = scmp.eq.s32.totalorder %s19, 1
      %p142 = scmp.ne.s32.totalorder %s137, %s139
      %p143 = scmp.eq.s32.totalorder %s19, 0
      %p144 = por %p142, %p143
      %p145 = scmp.ne.s32.totalorder %s137, %s139
      %p146 = scmp.eq.s32.totalorder %s24, 1
      %p147 = por %p145, %p146
      %p148 = scmp.ne.s32.totalorder %s139, %s140
      %p149 = scmp.eq.s32.totalorder %s24, 0
      %p150 = por %p148, %p149
      %p151 = scmp.ne.s32.totalorder %s139, %s140
      %p152 = scmp.eq.s32.totalorder %s25, 1
      %p153 = por %p151, %p152
      %p155 = scmp.ne.s32.totalorder %s140, %s154
      %p156 = scmp.eq.s32.totalorder %s25, 0
      %p157 = por %p155, %p156
      %s159 = sadd.s32 %s158, 1
      %p162 = scmp.eq.s32.totalorder %s19, 1
      %p163 = scmp.ne.s32.totalorder %s158, %s160
      %p164 = scmp.eq.s32.totalorder %s19, 0
      %p165 = por %p163, %p164
      %p166 = scmp.ne.s32.totalorder %s158, %s160
      %p167 = scmp.eq.s32.totalorder %s24, 1
      %p168 = por %p166, %p167
      %p169 = scmp.ne.s32.totalorder %s160, %s161
      %p170 = scmp.eq.s32.totalorder %s24, 0
      %p171 = por %p169, %p170
      %p172 = scmp.ne.s32.totalorder %s160, %s161
      %p173 = scmp.eq.s32.totalorder %s25, 1
      %p174 = por %p172, %p173
      %p176 = scmp.ne.s32.totalorder %s161, %s175
      %p177 = scmp.eq.s32.totalorder %s25, 0
      %p178 = por %p176, %p177
      %s180 = sadd.s32 %s179, 1
      %p183 = scmp.eq.s32.totalorder %s19, 1
      %p184 = scmp.ne.s32.totalorder %s179, %s181
      %p185 = scmp.eq.s32.totalorder %s19, 0
      %p186 = por %p184, %p185
      %p187 = scmp.ne.s32.totalorder %s179, %s181
      %p188 = scmp.eq.s32.totalorder %s24, 1
      %p189 = por %p187, %p188
      %p190 = scmp.ne.s32.totalorder %s181, %s182
      %p191 = scmp.eq.s32.totalorder %s24, 0
      %p192 = por %p190, %p191
      %p193 = scmp.ne.s32.totalorder %s181, %s182
      %p194 = scmp.eq.s32.totalorder %s25, 1
      %p195 = por %p193, %p194
      %p197 = scmp.ne.s32.totalorder %s182, %s196
      %p198 = scmp.eq.s32.totalorder %s25, 0
      %p199 = por %p197, %p198
      %s201 = sadd.s32 %s200, 1
      %p204 = scmp.eq.s32.totalorder %s19, 1
      %p205 = scmp.ne.s32.totalorder %s200, %s202
      %p206 = scmp.eq.s32.totalorder %s19, 0
      %p207 = por %p205, %p206
      %p208 = scmp.ne.s32.totalorder %s200, %s202
      %p209 = scmp.eq.s32.totalorder %s24, 1
      %p210 = por %p208, %p209
      %p211 = scmp.ne.s32.totalorder %s202, %s203
      %p212 = scmp.eq.s32.totalorder %s24, 0
      %p213 = por %p211, %p212
      %p214 = scmp.ne.s32.totalorder %s202, %s203
      %p215 = scmp.eq.s32.totalorder %s25, 1
      %p216 = por %p214, %p215
      %p218 = scmp.ne.s32.totalorder %s203, %s217
      %p219 = scmp.eq.s32.totalorder %s25, 0
      %p220 = por %p218, %p219
      %s221 = ssub.s32 %s19, %s26
      %p222 = scmp.eq.s32.totalorder %s221, 0
      %s224 = sadd.s32 %s223, 1
      %s225 = scalar_select %p222, %s223, %s224
      %p228 = pneg %p222
      %p229 = scmp.eq.s32.totalorder %s19, 1
      %p230 = por %p228, %p229
      %p231 = scmp.ne.s32.totalorder %s223, %s226
      %p232 = scmp.eq.s32.totalorder %s19, 0
      %p233 = por %p231, %p232
      %p234 = scmp.ne.s32.totalorder %s223, %s226
      %p235 = scmp.eq.s32.totalorder %s24, 1
      %p236 = por %p234, %p235
      %p237 = scmp.ne.s32.totalorder %s226, %s227
      %p238 = scmp.eq.s32.totalorder %s24, 0
      %p239 = por %p237, %p238
      %p240 = scmp.ne.s32.totalorder %s226, %s227
      %p241 = scmp.eq.s32.totalorder %s25, 1
      %p242 = por %p240, %p241
      %p244 = scmp.ne.s32.totalorder %s227, %s243
      %p245 = scmp.eq.s32.totalorder %s25, 0
      %p246 = por %p244, %p245
      %s247 = ssub.s32 %s19, %s26
      %p248 = scmp.eq.s32.totalorder %s247, 0
      %s250 = sadd.s32 %s249, 1
      %s251 = scalar_select %p248, %s249, %s250
      %p254 = pneg %p248
      %p255 = scmp.eq.s32.totalorder %s19, 1
      %p256 = por %p254, %p255
      %p257 = scmp.ne.s32.totalorder %s249, %s252
      %p258 = scmp.eq.s32.totalorder %s19, 0
      %p259 = por %p257, %p258
      %p260 = scmp.ne.s32.totalorder %s249, %s252
      %p261 = scmp.eq.s32.totalorder %s24, 1
      %p262 = por %p260, %p261
      %p263 = scmp.ne.s32.totalorder %s252, %s253
      %p264 = scmp.eq.s32.totalorder %s24, 0
      %p265 = por %p263, %p264
      %p266 = scmp.ne.s32.totalorder %s252, %s253
      %p267 = scmp.eq.s32.totalorder %s25, 1
      %p268 = por %p266, %p267
      %p270 = scmp.ne.s32.totalorder %s253, %s269
      %p271 = scmp.eq.s32.totalorder %s25, 0
      %p272 = por %p270, %p271
      %p273 = scmp.le.s32.totalorder 1, %s19
      %p274 = scmp.lt.s32.totalorder %s19, 3
      %p275 = pnand %p273, %p274
      %p276 = pneg %p275
      // Predicated region
      $region9: #{autoencoder_forward.1} parent=5 // pred_check
        _
      $region10: #{autoencoder_forward.1} parent=5 // pred_check_branch
        %278 = sbr.rel (%p275) target = $region12
      $region11: #{autoencoder_forward.1} parent=5 // pred_region
        %s279 = ssub.s32 %s19, 1
        // Predicated region
        $region13: #{autoencoder_forward.1} parent=11 // pred_check
          %p280 = pneg %p66
        $region14: #{autoencoder_forward.1} parent=11 // pred_check_branch
          %282 = sbr.rel (%p280) target = $region16
        $region15: #{autoencoder_forward.1} parent=11 // pred_region
          _
        $region16: #{autoencoder_forward.1} parent=11 // pred_fallthru
          _
        // Predicated region
        $region17: #{autoencoder_forward.1} parent=11 // pred_check
          %p283 = pneg %p87
        $region18: #{autoencoder_forward.1} parent=11 // pred_check_branch
          %285 = sbr.rel (%p283) target = $region20
        $region19: #{autoencoder_forward.1} parent=11 // pred_region
          _
        $region20: #{autoencoder_forward.1} parent=11 // pred_fallthru
          _
        // Predicated region
        $region21: #{autoencoder_forward.1} parent=11 // pred_check
          %p286 = pneg %p108
        $region22: #{autoencoder_forward.1} parent=11 // pred_check_branch
          %288 = sbr.rel (%p286) target = $region24
        $region23: #{autoencoder_forward.1} parent=11 // pred_region
          _
        $region24: #{autoencoder_forward.1} parent=11 // pred_fallthru
          _
        // Predicated region
        $region25: #{autoencoder_forward.1} parent=11 // pred_check
          %p289 = pneg %p129
        $region26: #{autoencoder_forward.1} parent=11 // pred_check_branch
          %291 = sbr.rel (%p289) target = $region28
        $region27: #{autoencoder_forward.1} parent=11 // pred_region
          _
        $region28: #{autoencoder_forward.1} parent=11 // pred_fallthru
          _
        // Predicated region
        $region29: #{autoencoder_forward.1} parent=11 // pred_check
          %p292 = pneg %p150
        $region30: #{autoencoder_forward.1} parent=11 // pred_check_branch
          %294 = sbr.rel (%p292) target = $region32
        $region31: #{autoencoder_forward.1} parent=11 // pred_region
          %s296 = ssub.s32 4096, 4096
          %297 = vsyncadd [#allocation3], %s296
          %s298 = sshll.u32 [#allocation2], 4
          %s299 = int_to_ptr.vmem [resolvable:$true] %s298
          %304 = dma.hbm_to_vmem [thread:$0]  %s5, 4096, %s299, [#allocation3], 256, 256, 16
        $region32: #{autoencoder_forward.1} parent=11 // pred_fallthru
          _
        // Predicated region
        $region33: #{autoencoder_forward.1} parent=11 // pred_check
          %p305 = pneg %p171
        $region34: #{autoencoder_forward.1} parent=11 // pred_check_branch
          %307 = sbr.rel (%p305) target = $region36
        $region35: #{autoencoder_forward.1} parent=11 // pred_region
          _
        $region36: #{autoencoder_forward.1} parent=11 // pred_fallthru
          _
        // Predicated region
        $region37: #{autoencoder_forward.1} parent=11 // pred_check
          %p308 = pneg %p192
        $region38: #{autoencoder_forward.1} parent=11 // pred_check_branch
          %310 = sbr.rel (%p308) target = $region40
        $region39: #{autoencoder_forward.1} parent=11 // pred_region
          %s312 = ssub.s32 8192, 8192
          %313 = vsyncadd [#allocation5], %s312
          %s314 = sshll.u32 [#allocation4], 4
          %s315 = int_to_ptr.vmem [resolvable:$true] %s314
          %320 = dma.hbm_to_vmem [thread:$0]  %s7, 8192, %s315, [#allocation5], 128, 128, 8
        $region40: #{autoencoder_forward.1} parent=11 // pred_fallthru
          _
        // Predicated region
        $region41: #{autoencoder_forward.1} parent=11 // pred_check
          %p321 = pneg %p213
        $region42: #{autoencoder_forward.1} parent=11 // pred_check_branch
          %323 = sbr.rel (%p321) target = $region44
        $region43: #{autoencoder_forward.1} parent=11 // pred_region
          _
        $region44: #{autoencoder_forward.1} parent=11 // pred_fallthru
          _
      $region12: #{autoencoder_forward.1} parent=5 // pred_fallthru
        _
      %p324 = scmp.lt.s32.totalorder %s19, 2
      // Predicated region
      $region45: #{autoencoder_forward.1} parent=5 // pred_check
        %p325 = pneg %p324
      $region46: #{autoencoder_forward.1} parent=5 // pred_check_branch
        %327 = sbr.rel (%p325) target = $region48
      $region47: #{autoencoder_forward.1} parent=5 // pred_region
        // Predicated region
        $region49: #{autoencoder_forward.1} parent=47 // pred_check
          %p328 = pneg %p39
        $region50: #{autoencoder_forward.1} parent=47 // pred_check_branch
          %330 = sbr.rel (%p328) target = $region52
        $region51: #{autoencoder_forward.1} parent=47 // pred_region
          %s331 = smul.u32 14, %s19
          %p332 = scmp.lt.s32.totalorder %s331, 27
          %s333 = scalar_select %p332, %s331, 27
          %s334 = smul.addr %s333, 2
          %s335 = smul.addr %s334, 8
          %s336 = scalar_lea.vmem %s0, %s335
          %s337 = smul.u32 14, %s19
        $region52: #{autoencoder_forward.1} parent=47 // pred_fallthru
          _
      $region48: #{autoencoder_forward.1} parent=5 // pred_fallthru
        _
      %p338 = scmp.le.s32.totalorder 1, %s19
      %p339 = scmp.lt.s32.totalorder %s19, 3
      %p340 = pnand %p338, %p339
      %p341 = pneg %p340
      // Predicated region
      $region53: #{autoencoder_forward.1} parent=5 // pred_check
        _
      $region54: #{autoencoder_forward.1} parent=5 // pred_check_branch
        %343 = sbr.rel (%p340) target = $region56
      $region55: #{autoencoder_forward.1} parent=5 // pred_region
        %s344 = ssub.s32 %s19, 1
        // Predicated region
        $region57: #{autoencoder_forward.1} parent=55 // pred_check
          %p345 = pneg %p150
        $region58: #{autoencoder_forward.1} parent=55 // pred_check_branch
          %347 = sbr.rel (%p345) target = $region60
        $region59: #{autoencoder_forward.1} parent=55 // pred_region
          %348 = dma.done [#allocation3], 4096
        $region60: #{autoencoder_forward.1} parent=55 // pred_fallthru
          _
        // Predicated region
        $region61: #{autoencoder_forward.1} parent=55 // pred_check
          %p349 = pneg %p192
        $region62: #{autoencoder_forward.1} parent=55 // pred_check_branch
          %351 = sbr.rel (%p349) target = $region64
        $region63: #{autoencoder_forward.1} parent=55 // pred_region
          %352 = dma.done [#allocation5], 8192
        $region64: #{autoencoder_forward.1} parent=55 // pred_fallthru
          _
        %s353 = smul.u32 14, %s24
        %p354 = scmp.lt.s32.totalorder %s353, 27
        %s355 = scalar_select %p354, %s353, 27
        %s356 = smul.addr %s355, 2
        %s357 = smul.addr %s356, 8
        %s358 = scalar_lea.vmem %s0, %s357
        %p359 = pneg %p45
        %p360 = pneg %p42
        %p361 = pneg %p66
        %p362 = pneg %p63
        %p363 = pneg %p87
        %p364 = pneg %p84
        %p365 = pneg %p108
        %p366 = pneg %p105
        %p367 = pneg %p129
        %p368 = pneg %p126
        %p369 = pneg %p150
        %p370 = pneg %p147
        %p371 = pneg %p171
        %p372 = pneg %p168
        %p373 = pneg %p192
        %p374 = pneg %p189
        %p375 = pneg %p213
        %p376 = pneg %p210
        %p377 = pneg %p239
        %p378 = pneg %p236
        %s379 = smul.u32 14, %s24
        %p380 = scmp.lt.s32.totalorder %s379, 27
        %s381 = scalar_select %p380, %s379, 27
        %s382 = smul.addr %s381, 8
        %s383 = scalar_lea.vmem %s9, %s382
        %p384 = pneg %p265
        %p385 = pneg %p262
        %s386 = smul.u32 14, %s24
        %p387 = scmp.lt.s32.totalorder %s386, 27
        %s388 = scalar_select %p387, %s386, 27
        %s389 = smul.addr %s388, 2
        %s390 = smul.addr %s389, 8
        %s391 = scalar_lea.vmem %s10, %s390
        %s392 = smul.u32 14, %s24
        %p393 = scmp.lt.s32.totalorder %s392, 27
        %s394 = scalar_select %p393, %s392, 27
        %s395 = smul.addr %s394, 2
        %s396 = smul.addr %s395, 8
        %s397 = scalar_lea.vmem %s0, %s396
        %s398 = smul.u32 14, %s24
        %s399 = smul.u32 14, %s24
        %p400 = scmp.lt.s32.totalorder %s399, 27
        %s401 = scalar_select %p400, %s399, 27
        %s402 = smul.addr %s401, 8
        %s403 = scalar_lea.vmem %s9, %s402
        %s404 = smul.u32 14, %s24
        %s405 = smul.u32 14, %s24
        %p406 = scmp.lt.s32.totalorder %s405, 27
        %s407 = scalar_select %p406, %s405, 27
        %s408 = smul.addr %s407, 2
        %s409 = smul.addr %s408, 8
        %s410 = scalar_lea.vmem %s10, %s409
        %s411 = smul.u32 14, %s24
        %v413 = vld [vmem:[%s397] sm:$0xff]
        %v414 = vld [vmem:[%s397 + $0x8] sm:$0xff]
        %v415 = vld [vmem:[%s397 + $0x10] sm:$0xff]
        %v416 = vld [vmem:[%s397 + $0x18] sm:$0xff]
        %v417 = vld [vmem:[%s397 + $0x20] sm:$0xff]
        %v418 = vld [vmem:[%s397 + $0x28] sm:$0xff]
        %v419 = vld [vmem:[%s397 + $0x30] sm:$0xff]
        %v420 = vld [vmem:[%s397 + $0x38] sm:$0xff]
        %v421 = vld [vmem:[%s397 + $0x40] sm:$0xff]
        %v422 = vld [vmem:[%s397 + $0x48] sm:$0xff]
        %v423 = vld [vmem:[%s397 + $0x50] sm:$0xff]
        %v424 = vld [vmem:[%s397 + $0x58] sm:$0xff]
        %v425 = vld [vmem:[%s397 + $0x60] sm:$0xff]
        %v426 = vld [vmem:[%s397 + $0x68] sm:$0xff]
        %v427 = vld [vmem:[%s397 + $0x70] sm:$0xff]
        %v428 = vld [vmem:[%s397 + $0x78] sm:$0xff]
        %v429 = vld [vmem:[%s397 + $0x80] sm:$0xff]
        %v430 = vld [vmem:[%s397 + $0x88] sm:$0xff]
        %v431 = vld [vmem:[%s397 + $0x90] sm:$0xff]
        %v432 = vld [vmem:[%s397 + $0x98] sm:$0xff]
        %v433 = vld [vmem:[%s397 + $0xa0] sm:$0xff]
        %v434 = vld [vmem:[%s397 + $0xa8] sm:$0xff]
        %v435 = vld [vmem:[%s397 + $0xb0] sm:$0xff]
        %v436 = vld [vmem:[%s397 + $0xb8] sm:$0xff]
        %v437 = vld [vmem:[%s397 + $0xc0] sm:$0xff]
        %v438 = vld [vmem:[%s397 + $0xc8] sm:$0xff]
        %v439 = vld [vmem:[%s397 + $0xd0] sm:$0xff]
        %v440 = vld [vmem:[%s397 + $0xd8] sm:$0xff]
        %v441 = vpack.c.bf16 %v415, %v413
        %v442 = vpack.c.bf16 %v416, %v414
        %v443 = vpack.c.bf16 %v419, %v417
        %v444 = vpack.c.bf16 %v420, %v418
        %v445 = vpack.c.bf16 %v423, %v421
        %v446 = vpack.c.bf16 %v424, %v422
        %v447 = vpack.c.bf16 %v427, %v425
        %v448 = vpack.c.bf16 %v428, %v426
        %v449 = vpack.c.bf16 %v431, %v429
        %v450 = vpack.c.bf16 %v432, %v430
        %v451 = vpack.c.bf16 %v435, %v433
        %v452 = vpack.c.bf16 %v436, %v434
        %v453 = vpack.c.bf16 %v439, %v437
        %v454 = vpack.c.bf16 %v440, %v438
        %v455 = vld [vmem:[%s1] sm:$0xff]
        %v456 = vld [vmem:[%s1 + $0x8] sm:$0xff]
        %v457 = vld [vmem:[%s1 + $0x10] sm:$0xff]
        %v458 = vld [vmem:[%s1 + $0x18] sm:$0xff]
        %v459 = vld [vmem:[%s1 + $0x20] sm:$0xff]
        %v460 = vld [vmem:[%s1 + $0x28] sm:$0xff]
        %v461 = vld [vmem:[%s1 + $0x30] sm:$0xff]
        %v462 = vld [vmem:[%s1 + $0x38] sm:$0xff]
        %v463 = vld [vmem:[%s1 + $0x40] sm:$0xff]
        %v464 = vld [vmem:[%s1 + $0x48] sm:$0xff]
        %v465 = vld [vmem:[%s1 + $0x50] sm:$0xff]
        %v466 = vld [vmem:[%s1 + $0x58] sm:$0xff]
        %v467 = vld [vmem:[%s1 + $0x60] sm:$0xff]
        %v468 = vld [vmem:[%s1 + $0x68] sm:$0xff]
        %v469 = vld [vmem:[%s1 + $0x70] sm:$0xff]
        %v470 = vld [vmem:[%s1 + $0x78] sm:$0xff]
        %v471 = vld [vmem:[%s1 + $0x80] sm:$0xff]
        %v472 = vld [vmem:[%s1 + $0x88] sm:$0xff]
        %v473 = vld [vmem:[%s1 + $0x90] sm:$0xff]
        %v474 = vld [vmem:[%s1 + $0x98] sm:$0xff]
        %v475 = vld [vmem:[%s1 + $0xa0] sm:$0xff]
        %v476 = vld [vmem:[%s1 + $0xa8] sm:$0xff]
        %v477 = vld [vmem:[%s1 + $0xb0] sm:$0xff]
        %v478 = vld [vmem:[%s1 + $0xb8] sm:$0xff]
        %v479 = vld [vmem:[%s1 + $0xc0] sm:$0xff]
        %v480 = vld [vmem:[%s1 + $0xc8] sm:$0xff]
        %v481 = vld [vmem:[%s1 + $0xd0] sm:$0xff]
        %v482 = vld [vmem:[%s1 + $0xd8] sm:$0xff]
        %v483 = vld [vmem:[%s1 + $0xe0] sm:$0xff]
        %v484 = vld [vmem:[%s1 + $0xe8] sm:$0xff]
        %v485 = vld [vmem:[%s1 + $0xf0] sm:$0xff]
        %v486 = vld [vmem:[%s1 + $0xf8] sm:$0xff]
        %v487 = vld [vmem:[%s1 + $0x100] sm:$0xff]
        %v488 = vld [vmem:[%s1 + $0x108] sm:$0xff]
        %v489 = vld [vmem:[%s1 + $0x110] sm:$0xff]
        %v490 = vld [vmem:[%s1 + $0x118] sm:$0xff]
        %v491 = vld [vmem:[%s1 + $0x120] sm:$0xff]
        %v492 = vld [vmem:[%s1 + $0x128] sm:$0xff]
        %v493 = vld [vmem:[%s1 + $0x130] sm:$0xff]
        %v494 = vld [vmem:[%s1 + $0x138] sm:$0xff]
        %v495 = vld [vmem:[%s1 + $0x140] sm:$0xff]
        %v496 = vld [vmem:[%s1 + $0x148] sm:$0xff]
        %v497 = vld [vmem:[%s1 + $0x150] sm:$0xff]
        %v498 = vld [vmem:[%s1 + $0x158] sm:$0xff]
        %v499 = vld [vmem:[%s1 + $0x160] sm:$0xff]
        %v500 = vld [vmem:[%s1 + $0x168] sm:$0xff]
        %v501 = vld [vmem:[%s1 + $0x170] sm:$0xff]
        %v502 = vld [vmem:[%s1 + $0x178] sm:$0xff]
        %v503 = vld [vmem:[%s1 + $0x180] sm:$0xff]
        %v504 = vld [vmem:[%s1 + $0x188] sm:$0xff]
        %v505 = vld [vmem:[%s1 + $0x190] sm:$0xff]
        %v506 = vld [vmem:[%s1 + $0x198] sm:$0xff]
        %v507 = vld [vmem:[%s1 + $0x1a0] sm:$0xff]
        %v508 = vld [vmem:[%s1 + $0x1a8] sm:$0xff]
        %v509 = vld [vmem:[%s1 + $0x1b0] sm:$0xff]
        %v510 = vld [vmem:[%s1 + $0x1b8] sm:$0xff]
        %v511 = vld [vmem:[%s1 + $0x1c0] sm:$0xff]
        %v512 = vld [vmem:[%s1 + $0x1c8] sm:$0xff]
        %v513 = vld [vmem:[%s1 + $0x1d0] sm:$0xff]
        %v514 = vld [vmem:[%s1 + $0x1d8] sm:$0xff]
        %v515 = vld [vmem:[%s1 + $0x1e0] sm:$0xff]
        %v516 = vld [vmem:[%s1 + $0x1e8] sm:$0xff]
        %v517 = vld [vmem:[%s1 + $0x1f0] sm:$0xff]
        %v518 = vld [vmem:[%s1 + $0x1f8] sm:$0xff]
        %v519 = vld [vmem:[%s2] sm:$0xf]
        %v521 = vlaneseq
        %v522 = vshrl.u32 %v521, 7
        %v523 = vsub.s32 0, %v522
        %v524 = vrot.slane %v519, %v523
        %v525 = vlaneseq
        %v526 = vshrl.u32 %v525, 7
        %v527 = vsub.s32 1, %v526
        %v528 = vrot.slane %v519, %v527
        %v529 = vlaneseq
        %v530 = vshrl.u32 %v529, 7
        %v531 = vsub.s32 2, %v530
        %v532 = vrot.slane %v519, %v531
        %v533 = vlaneseq
        %v534 = vshrl.u32 %v533, 7
        %v535 = vsub.s32 3, %v534
        %v536 = vrot.slane %v519, %v535
        %v605 = vunpack.c.l.b16 %v455
        %v606 = vunpack.c.h.b16 %v455
        %v607 = vunpack.c.l.b16 %v456
        %v608 = vunpack.c.h.b16 %v456
        %v609 = vunpack.c.l.b16 %v457
        %v610 = vunpack.c.h.b16 %v457
        %v611 = vunpack.c.l.b16 %v458
        %v612 = vunpack.c.h.b16 %v458
        %v613 = vunpack.c.l.b16 %v459
        %v614 = vunpack.c.h.b16 %v459
        %v615 = vunpack.c.l.b16 %v460
        %v616 = vunpack.c.h.b16 %v460
        %v617 = vunpack.c.l.b16 %v461
        %v618 = vunpack.c.h.b16 %v461
        %v619 = vunpack.c.l.b16 %v462
        %v620 = vunpack.c.h.b16 %v462
        %v621 = vunpack.c.l.b16 %v463
        %v622 = vunpack.c.h.b16 %v463
        %v623 = vunpack.c.l.b16 %v464
        %v624 = vunpack.c.h.b16 %v464
        %v625 = vunpack.c.l.b16 %v465
        %v626 = vunpack.c.h.b16 %v465
        %v627 = vunpack.c.l.b16 %v466
        %v628 = vunpack.c.h.b16 %v466
        %v629 = vunpack.c.l.b16 %v467
        %v630 = vunpack.c.h.b16 %v467
        %v631 = vunpack.c.l.b16 %v468
        %v632 = vunpack.c.h.b16 %v468
        %v633 = vunpack.c.l.b16 %v469
        %v634 = vunpack.c.h.b16 %v469
        %v635 = vunpack.c.l.b16 %v470
        %v636 = vunpack.c.h.b16 %v470
        %v637 = vunpack.c.l.b16 %v471
        %v638 = vunpack.c.h.b16 %v471
        %v639 = vunpack.c.l.b16 %v472
        %v640 = vunpack.c.h.b16 %v472
        %v641 = vunpack.c.l.b16 %v473
        %v642 = vunpack.c.h.b16 %v473
        %v643 = vunpack.c.l.b16 %v474
        %v644 = vunpack.c.h.b16 %v474
        %v645 = vunpack.c.l.b16 %v475
        %v646 = vunpack.c.h.b16 %v475
        %v647 = vunpack.c.l.b16 %v476
        %v648 = vunpack.c.h.b16 %v476
        %v649 = vunpack.c.l.b16 %v477
        %v650 = vunpack.c.h.b16 %v477
        %v651 = vunpack.c.l.b16 %v478
        %v652 = vunpack.c.h.b16 %v478
        %v653 = vunpack.c.l.b16 %v479
        %v654 = vunpack.c.h.b16 %v479
        %v655 = vunpack.c.l.b16 %v480
        %v656 = vunpack.c.h.b16 %v480
        %v657 = vunpack.c.l.b16 %v481
        %v658 = vunpack.c.h.b16 %v481
        %v659 = vunpack.c.l.b16 %v482
        %v660 = vunpack.c.h.b16 %v482
        %v661 = vunpack.c.l.b16 %v483
        %v662 = vunpack.c.h.b16 %v483
        %v663 = vunpack.c.l.b16 %v484
        %v664 = vunpack.c.h.b16 %v484
        %v665 = vunpack.c.l.b16 %v485
        %v666 = vunpack.c.h.b16 %v485
        %v667 = vunpack.c.l.b16 %v486
        %v668 = vunpack.c.h.b16 %v486
        %v669 = vunpack.c.l.b16 %v487
        %v670 = vunpack.c.h.b16 %v487
        %v671 = vunpack.c.l.b16 %v488
        %v672 = vunpack.c.h.b16 %v488
        %v673 = vunpack.c.l.b16 %v489
        %v674 = vunpack.c.h.b16 %v489
        %v675 = vunpack.c.l.b16 %v490
        %v676 = vunpack.c.h.b16 %v490
        %v677 = vunpack.c.l.b16 %v491
        %v678 = vunpack.c.h.b16 %v491
        %v679 = vunpack.c.l.b16 %v492
        %v680 = vunpack.c.h.b16 %v492
        %v681 = vunpack.c.l.b16 %v493
        %v682 = vunpack.c.h.b16 %v493
        %v683 = vunpack.c.l.b16 %v494
        %v684 = vunpack.c.h.b16 %v494
        %v685 = vunpack.c.l.b16 %v495
        %v686 = vunpack.c.h.b16 %v495
        %v687 = vunpack.c.l.b16 %v496
        %v688 = vunpack.c.h.b16 %v496
        %v689 = vunpack.c.l.b16 %v497
        %v690 = vunpack.c.h.b16 %v497
        %v691 = vunpack.c.l.b16 %v498
        %v692 = vunpack.c.h.b16 %v498
        %v693 = vunpack.c.l.b16 %v499
        %v694 = vunpack.c.h.b16 %v499
        %v695 = vunpack.c.l.b16 %v500
        %v696 = vunpack.c.h.b16 %v500
        %v697 = vunpack.c.l.b16 %v501
        %v698 = vunpack.c.h.b16 %v501
        %v699 = vunpack.c.l.b16 %v502
        %v700 = vunpack.c.h.b16 %v502
        %v701 = vunpack.c.l.b16 %v503
        %v702 = vunpack.c.h.b16 %v503
        %v703 = vunpack.c.l.b16 %v504
        %v704 = vunpack.c.h.b16 %v504
        %v705 = vunpack.c.l.b16 %v505
        %v706 = vunpack.c.h.b16 %v505
        %v707 = vunpack.c.l.b16 %v506
        %v708 = vunpack.c.h.b16 %v506
        %v709 = vunpack.c.l.b16 %v507
        %v710 = vunpack.c.h.b16 %v507
        %v711 = vunpack.c.l.b16 %v508
        %v712 = vunpack.c.h.b16 %v508
        %v713 = vunpack.c.l.b16 %v509
        %v714 = vunpack.c.h.b16 %v509
        %v715 = vunpack.c.l.b16 %v510
        %v716 = vunpack.c.h.b16 %v510
        %v717 = vunpack.c.l.b16 %v511
        %v718 = vunpack.c.h.b16 %v511
        %v719 = vunpack.c.l.b16 %v512
        %v720 = vunpack.c.h.b16 %v512
        %v721 = vunpack.c.l.b16 %v513
        %v722 = vunpack.c.h.b16 %v513
        %v723 = vunpack.c.l.b16 %v514
        %v724 = vunpack.c.h.b16 %v514
        %v725 = vunpack.c.l.b16 %v515
        %v726 = vunpack.c.h.b16 %v515
        %v727 = vunpack.c.l.b16 %v516
        %v728 = vunpack.c.h.b16 %v516
        %v729 = vunpack.c.l.b16 %v517
        %v730 = vunpack.c.h.b16 %v517
        %v731 = vunpack.c.l.b16 %v518
        %v732 = vunpack.c.h.b16 %v518
        %v733 = vpack.c.b16 %v609, %v605
        %v734 = vpack.c.b16 %v610, %v606
        %v735 = vpack.c.b16 %v611, %v607
        %v736 = vpack.c.b16 %v612, %v608
        %v737 = vpack.c.b16 %v617, %v613
        %v738 = vpack.c.b16 %v618, %v614
        %v739 = vpack.c.b16 %v619, %v615
        %v740 = vpack.c.b16 %v620, %v616
        %v741 = vpack.c.b16 %v625, %v621
        %v742 = vpack.c.b16 %v626, %v622
        %v743 = vpack.c.b16 %v627, %v623
        %v744 = vpack.c.b16 %v628, %v624
        %v745 = vpack.c.b16 %v633, %v629
        %v746 = vpack.c.b16 %v634, %v630
        %v747 = vpack.c.b16 %v635, %v631
        %v748 = vpack.c.b16 %v636, %v632
        %v749 = vpack.c.b16 %v641, %v637
        %v750 = vpack.c.b16 %v642, %v638
        %v751 = vpack.c.b16 %v643, %v639
        %v752 = vpack.c.b16 %v644, %v640
        %v753 = vpack.c.b16 %v649, %v645
        %v754 = vpack.c.b16 %v650, %v646
        %v755 = vpack.c.b16 %v651, %v647
        %v756 = vpack.c.b16 %v652, %v648
        %v757 = vpack.c.b16 %v657, %v653
        %v758 = vpack.c.b16 %v658, %v654
        %v759 = vpack.c.b16 %v659, %v655
        %v760 = vpack.c.b16 %v660, %v656
        %v761 = vpack.c.b16 %v665, %v661
        %v762 = vpack.c.b16 %v666, %v662
        %v763 = vpack.c.b16 %v667, %v663
        %v764 = vpack.c.b16 %v668, %v664
        %v765 = vpack.c.b16 %v673, %v669
        %v766 = vpack.c.b16 %v674, %v670
        %v767 = vpack.c.b16 %v675, %v671
        %v768 = vpack.c.b16 %v676, %v672
        %v769 = vpack.c.b16 %v681, %v677
        %v770 = vpack.c.b16 %v682, %v678
        %v771 = vpack.c.b16 %v683, %v679
        %v772 = vpack.c.b16 %v684, %v680
        %v773 = vpack.c.b16 %v689, %v685
        %v774 = vpack.c.b16 %v690, %v686
        %v775 = vpack.c.b16 %v691, %v687
        %v776 = vpack.c.b16 %v692, %v688
        %v777 = vpack.c.b16 %v697, %v693
        %v778 = vpack.c.b16 %v698, %v694
        %v779 = vpack.c.b16 %v699, %v695
        %v780 = vpack.c.b16 %v700, %v696
        %v781 = vpack.c.b16 %v705, %v701
        %v782 = vpack.c.b16 %v706, %v702
        %v783 = vpack.c.b16 %v707, %v703
        %v784 = vpack.c.b16 %v708, %v704
        %v785 = vpack.c.b16 %v713, %v709
        %v786 = vpack.c.b16 %v714, %v710
        %v787 = vpack.c.b16 %v715, %v711
        %v788 = vpack.c.b16 %v716, %v712
        %v789 = vpack.c.b16 %v721, %v717
        %v790 = vpack.c.b16 %v722, %v718
        %v791 = vpack.c.b16 %v723, %v719
        %v792 = vpack.c.b16 %v724, %v720
        %v793 = vpack.c.b16 %v729, %v725
        %v794 = vpack.c.b16 %v730, %v726
        %v795 = vpack.c.b16 %v731, %v727
        %v796 = vpack.c.b16 %v732, %v728
        %861 = vmatprep.subr.bf16.mxu0 %v762
        %862 = vmatpush1.bf16.msra.mxu0 %v761
        %863 = vmatprep.subr.bf16.mxu0 %v758
        %864 = vmatpush1.bf16.msra.mxu0 %v757
        %865 = vmatprep.subr.bf16.mxu0 %v754
        %866 = vmatpush1.bf16.msra.mxu0 %v753
        %867 = vmatprep.subr.bf16.mxu0 %v750
        %868 = vmatpush1.bf16.msra.mxu0 %v749
        %869 = vmatprep.subr.bf16.mxu0 %v746
        %870 = vmatpush1.bf16.msra.mxu0 %v745
        %871 = vmatprep.subr.bf16.mxu0 %v742
        %872 = vmatpush1.bf16.msra.mxu0 %v741
        %873 = vmatprep.subr.bf16.mxu0 %v738
        %874 = vmatpush1.bf16.msra.mxu0 %v737
        %875 = vmatprep.subr.bf16.mxu0 %v734
        %876 = vmatpush1.bf16.msra.mxu0 %v733
        %877 = vmatprep.subr.bf16.mxu0 %v794
        %878 = vmatpush2.bf16.msra.mxu0 %v793
        %879 = vmatprep.subr.bf16.mxu0 %v790
        %880 = vmatpush2.bf16.msra.mxu0 %v789
        %881 = vmatprep.subr.bf16.mxu0 %v786
        %882 = vmatpush2.bf16.msra.mxu0 %v785
        %883 = vmatprep.subr.bf16.mxu0 %v782
        %884 = vmatpush2.bf16.msra.mxu0 %v781
        %885 = vmatprep.subr.bf16.mxu0 %v778
        %886 = vmatpush2.bf16.msra.mxu0 %v777
        %887 = vmatprep.subr.bf16.mxu0 %v774
        %888 = vmatpush2.bf16.msra.mxu0 %v773
        %889 = vmatprep.subr.bf16.mxu0 %v770
        %890 = vmatpush2.bf16.msra.mxu0 %v769
        %891 = vmatprep.subr.bf16.mxu0 %v766
        %892 = vmatpush2.bf16.msra.mxu0 %v765
        %893 = vmatprep.mubr.bf16.mxu0 %v442
        %894 = vmatmul.mubr.bf16.gmra.mxu0 %v441
        %v895 = vpop.f32.mrf.mxu0
        %v896 = vadd.f32 %v524, %v895
        %v897 = vpop.f32.mrf.mxu0
        %v898 = vadd.f32 %v528, %v897
        %v899 = vpop.f32.mrf.mxu0
        %v900 = vadd.f32 %v524, %v899
        %v901 = vpop.f32.mrf.mxu0
        %v902 = vadd.f32 %v528, %v901
        %903 = vmatprep.mubr.bf16.mxu0 %v444
        %904 = vmatmul.mubr.bf16.gmra.mxu0 %v443
        %v905 = vpop.f32.mrf.mxu0
        %v906 = vadd.f32 %v524, %v905
        %v907 = vpop.f32.mrf.mxu0
        %v908 = vadd.f32 %v528, %v907
        %v909 = vpop.f32.mrf.mxu0
        %v910 = vadd.f32 %v524, %v909
        %v911 = vpop.f32.mrf.mxu0
        %v912 = vadd.f32 %v528, %v911
        %913 = vmatprep.mubr.bf16.mxu0 %v446
        %914 = vmatmul.mubr.bf16.gmra.mxu0 %v445
        %v915 = vpop.f32.mrf.mxu0
        %v916 = vadd.f32 %v524, %v915
        %v917 = vpop.f32.mrf.mxu0
        %v918 = vadd.f32 %v528, %v917
        %v919 = vpop.f32.mrf.mxu0
        %v920 = vadd.f32 %v524, %v919
        %v921 = vpop.f32.mrf.mxu0
        %v922 = vadd.f32 %v528, %v921
        %923 = vmatprep.mubr.bf16.mxu0 %v448
        %924 = vmatmul.mubr.bf16.gmra.mxu0 %v447
        %v925 = vpop.f32.mrf.mxu0
        %v926 = vadd.f32 %v524, %v925
        %v927 = vpop.f32.mrf.mxu0
        %v928 = vadd.f32 %v528, %v927
        %v929 = vpop.f32.mrf.mxu0
        %v930 = vadd.f32 %v524, %v929
        %v931 = vpop.f32.mrf.mxu0
        %v932 = vadd.f32 %v528, %v931
        %933 = vmatprep.mubr.bf16.mxu0 %v450
        %934 = vmatmul.mubr.bf16.gmra.mxu0 %v449
        %v935 = vpop.f32.mrf.mxu0
        %v936 = vadd.f32 %v524, %v935
        %v937 = vpop.f32.mrf.mxu0
        %v938 = vadd.f32 %v528, %v937
        %v939 = vpop.f32.mrf.mxu0
        %v940 = vadd.f32 %v524, %v939
        %v941 = vpop.f32.mrf.mxu0
        %v942 = vadd.f32 %v528, %v941
        %943 = vmatprep.mubr.bf16.mxu0 %v452
        %944 = vmatmul.mubr.bf16.gmra.mxu0 %v451
        %v945 = vpop.f32.mrf.mxu0
        %v946 = vadd.f32 %v524, %v945
        %v947 = vpop.f32.mrf.mxu0
        %v948 = vadd.f32 %v528, %v947
        %v949 = vpop.f32.mrf.mxu0
        %v950 = vadd.f32 %v524, %v949
        %v951 = vpop.f32.mrf.mxu0
        %v952 = vadd.f32 %v528, %v951
        %953 = vmatprep.mubr.bf16.mxu0 %v454
        %954 = vmatmul.mubr.bf16.gmra.mxu0 %v453
        %v955 = vpop.f32.mrf.mxu0
        %v956 = vadd.f32 %v524, %v955
        %v957 = vpop.f32.mrf.mxu0
        %v958 = vadd.f32 %v528, %v957
        %v959 = vpop.f32.mrf.mxu0
        %v960 = vadd.f32 %v524, %v959
        %v961 = vpop.f32.mrf.mxu0
        %v962 = vadd.f32 %v528, %v961
        %963 = vdwg.mxu0
        %964 = vmatprep.subr.bf16.mxu0 %v764
        %965 = vmatpush1.bf16.msra.mxu0 %v763
        %966 = vmatprep.subr.bf16.mxu0 %v760
        %967 = vmatpush1.bf16.msra.mxu0 %v759
        %968 = vmatprep.subr.bf16.mxu0 %v756
        %969 = vmatpush1.bf16.msra.mxu0 %v755
        %970 = vmatprep.subr.bf16.mxu0 %v752
        %971 = vmatpush1.bf16.msra.mxu0 %v751
        %972 = vmatprep.subr.bf16.mxu0 %v748
        %973 = vmatpush1.bf16.msra.mxu0 %v747
        %974 = vmatprep.subr.bf16.mxu0 %v744
        %975 = vmatpush1.bf16.msra.mxu0 %v743
        %976 = vmatprep.subr.bf16.mxu0 %v740
        %977 = vmatpush1.bf16.msra.mxu0 %v739
        %978 = vmatprep.subr.bf16.mxu0 %v736
        %979 = vmatpush1.bf16.msra.mxu0 %v735
        %980 = vmatprep.subr.bf16.mxu0 %v796
        %981 = vmatpush2.bf16.msra.mxu0 %v795
        %982 = vmatprep.subr.bf16.mxu0 %v792
        %983 = vmatpush2.bf16.msra.mxu0 %v791
        %984 = vmatprep.subr.bf16.mxu0 %v788
        %985 = vmatpush2.bf16.msra.mxu0 %v787
        %986 = vmatprep.subr.bf16.mxu0 %v784
        %987 = vmatpush2.bf16.msra.mxu0 %v783
        %988 = vmatprep.subr.bf16.mxu0 %v780
        %989 = vmatpush2.bf16.msra.mxu0 %v779
        %990 = vmatprep.subr.bf16.mxu0 %v776
        %991 = vmatpush2.bf16.msra.mxu0 %v775
        %992 = vmatprep.subr.bf16.mxu0 %v772
        %993 = vmatpush2.bf16.msra.mxu0 %v771
        %994 = vmatprep.subr.bf16.mxu0 %v768
        %995 = vmatpush2.bf16.msra.mxu0 %v767
        %996 = vmatprep.mubr.bf16.mxu0 %v442
        %997 = vmatmul.mubr.bf16.gmra.mxu0 %v441
        %v998 = vpop.f32.mrf.mxu0
        %v999 = vadd.f32 %v532, %v998
        %v1000 = vpop.f32.mrf.mxu0
        %v1001 = vadd.f32 %v536, %v1000
        %v1002 = vpop.f32.mrf.mxu0
        %v1003 = vadd.f32 %v532, %v1002
        %v1004 = vpop.f32.mrf.mxu0
        %v1005 = vadd.f32 %v536, %v1004
        %1006 = vmatprep.mubr.bf16.mxu0 %v444
        %1007 = vmatmul.mubr.bf16.gmra.mxu0 %v443
        %v1008 = vpop.f32.mrf.mxu0
        %v1009 = vadd.f32 %v532, %v1008
        %v1010 = vpop.f32.mrf.mxu0
        %v1011 = vadd.f32 %v536, %v1010
        %v1012 = vpop.f32.mrf.mxu0
        %v1013 = vadd.f32 %v532, %v1012
        %v1014 = vpop.f32.mrf.mxu0
        %v1015 = vadd.f32 %v536, %v1014
        %1016 = vmatprep.mubr.bf16.mxu0 %v446
        %1017 = vmatmul.mubr.bf16.gmra.mxu0 %v445
        %v1018 = vpop.f32.mrf.mxu0
        %v1019 = vadd.f32 %v532, %v1018
        %v1020 = vpop.f32.mrf.mxu0
        %v1021 = vadd.f32 %v536, %v1020
        %v1022 = vpop.f32.mrf.mxu0
        %v1023 = vadd.f32 %v532, %v1022
        %v1024 = vpop.f32.mrf.mxu0
        %v1025 = vadd.f32 %v536, %v1024
        %1026 = vmatprep.mubr.bf16.mxu0 %v448
        %1027 = vmatmul.mubr.bf16.gmra.mxu0 %v447
        %v1028 = vpop.f32.mrf.mxu0
        %v1029 = vadd.f32 %v532, %v1028
        %v1030 = vpop.f32.mrf.mxu0
        %v1031 = vadd.f32 %v536, %v1030
        %v1032 = vpop.f32.mrf.mxu0
        %v1033 = vadd.f32 %v532, %v1032
        %v1034 = vpop.f32.mrf.mxu0
        %v1035 = vadd.f32 %v536, %v1034
        %1036 = vmatprep.mubr.bf16.mxu0 %v450
        %1037 = vmatmul.mubr.bf16.gmra.mxu0 %v449
        %v1038 = vpop.f32.mrf.mxu0
        %v1039 = vadd.f32 %v532, %v1038
        %v1040 = vpop.f32.mrf.mxu0
        %v1041 = vadd.f32 %v536, %v1040
        %v1042 = vpop.f32.mrf.mxu0
        %v1043 = vadd.f32 %v532, %v1042
        %v1044 = vpop.f32.mrf.mxu0
        %v1045 = vadd.f32 %v536, %v1044
        %1046 = vmatprep.mubr.bf16.mxu0 %v452
        %1047 = vmatmul.mubr.bf16.gmra.mxu0 %v451
        %v1048 = vpop.f32.mrf.mxu0
        %v1049 = vadd.f32 %v532, %v1048
        %v1050 = vpop.f32.mrf.mxu0
        %v1051 = vadd.f32 %v536, %v1050
        %v1052 = vpop.f32.mrf.mxu0
        %v1053 = vadd.f32 %v532, %v1052
        %v1054 = vpop.f32.mrf.mxu0
        %v1055 = vadd.f32 %v536, %v1054
        %1056 = vmatprep.mubr.bf16.mxu0 %v454
        %1057 = vmatmul.mubr.bf16.gmra.mxu0 %v453
        %v1058 = vpop.f32.mrf.mxu0
        %v1059 = vadd.f32 %v532, %v1058
        %v1060 = vpop.f32.mrf.mxu0
        %v1061 = vadd.f32 %v536, %v1060
        %v1062 = vpop.f32.mrf.mxu0
        %v1063 = vadd.f32 %v532, %v1062
        %v1064 = vpop.f32.mrf.mxu0
        %v1065 = vadd.f32 %v536, %v1064
        %1066 = vdwg.mxu0
        %v1067 = vmax.f32 %v896, 0.0
        %v1068 = vmax.f32 %v898, 0.0
        %v1069 = vmax.f32 %v999, 0.0
        %v1070 = vmax.f32 %v1001, 0.0
        %v1071 = vmax.f32 %v900, 0.0
        %v1072 = vmax.f32 %v902, 0.0
        %v1073 = vmax.f32 %v1003, 0.0
        %v1074 = vmax.f32 %v1005, 0.0
        %v1075 = vmax.f32 %v906, 0.0
        %v1076 = vmax.f32 %v908, 0.0
        %v1077 = vmax.f32 %v1009, 0.0
        %v1078 = vmax.f32 %v1011, 0.0
        %v1079 = vmax.f32 %v910, 0.0
        %v1080 = vmax.f32 %v912, 0.0
        %v1081 = vmax.f32 %v1013, 0.0
        %v1082 = vmax.f32 %v1015, 0.0
        %v1083 = vmax.f32 %v916, 0.0
        %v1084 = vmax.f32 %v918, 0.0
        %v1085 = vmax.f32 %v1019, 0.0
        %v1086 = vmax.f32 %v1021, 0.0
        %v1087 = vmax.f32 %v920, 0.0
        %v1088 = vmax.f32 %v922, 0.0
        %v1089 = vmax.f32 %v1023, 0.0
        %v1090 = vmax.f32 %v1025, 0.0
        %v1091 = vmax.f32 %v926, 0.0
        %v1092 = vmax.f32 %v928, 0.0
        %v1093 = vmax.f32 %v1029, 0.0
        %v1094 = vmax.f32 %v1031, 0.0
        %v1095 = vmax.f32 %v930, 0.0
        %v1096 = vmax.f32 %v932, 0.0
        %v1097 = vmax.f32 %v1033, 0.0
        %v1098 = vmax.f32 %v1035, 0.0
        %v1099 = vmax.f32 %v936, 0.0
        %v1100 = vmax.f32 %v938, 0.0
        %v1101 = vmax.f32 %v1039, 0.0
        %v1102 = vmax.f32 %v1041, 0.0
        %v1103 = vmax.f32 %v940, 0.0
        %v1104 = vmax.f32 %v942, 0.0
        %v1105 = vmax.f32 %v1043, 0.0
        %v1106 = vmax.f32 %v1045, 0.0
        %v1107 = vmax.f32 %v946, 0.0
        %v1108 = vmax.f32 %v948, 0.0
        %v1109 = vmax.f32 %v1049, 0.0
        %v1110 = vmax.f32 %v1051, 0.0
        %v1111 = vmax.f32 %v950, 0.0
        %v1112 = vmax.f32 %v952, 0.0
        %v1113 = vmax.f32 %v1053, 0.0
        %v1114 = vmax.f32 %v1055, 0.0
        %v1115 = vmax.f32 %v956, 0.0
        %v1116 = vmax.f32 %v958, 0.0
        %v1117 = vmax.f32 %v1059, 0.0
        %v1118 = vmax.f32 %v1061, 0.0
        %v1119 = vmax.f32 %v960, 0.0
        %v1120 = vmax.f32 %v962, 0.0
        %v1121 = vmax.f32 %v1063, 0.0
        %v1122 = vmax.f32 %v1065, 0.0
        %v1123 = vpack.c.bf16 %v1071, %v1067
        %v1124 = vpack.c.bf16 %v1072, %v1068
        %v1125 = vpack.c.bf16 %v1073, %v1069
        %v1126 = vpack.c.bf16 %v1074, %v1070
        %v1127 = vpack.c.bf16 %v1079, %v1075
        %v1128 = vpack.c.bf16 %v1080, %v1076
        %v1129 = vpack.c.bf16 %v1081, %v1077
        %v1130 = vpack.c.bf16 %v1082, %v1078
        %v1131 = vpack.c.bf16 %v1087, %v1083
        %v1132 = vpack.c.bf16 %v1088, %v1084
        %v1133 = vpack.c.bf16 %v1089, %v1085
        %v1134 = vpack.c.bf16 %v1090, %v1086
        %v1135 = vpack.c.bf16 %v1095, %v1091
        %v1136 = vpack.c.bf16 %v1096, %v1092
        %v1137 = vpack.c.bf16 %v1097, %v1093
        %v1138 = vpack.c.bf16 %v1098, %v1094
        %v1139 = vpack.c.bf16 %v1103, %v1099
        %v1140 = vpack.c.bf16 %v1104, %v1100
        %v1141 = vpack.c.bf16 %v1105, %v1101
        %v1142 = vpack.c.bf16 %v1106, %v1102
        %v1143 = vpack.c.bf16 %v1111, %v1107
        %v1144 = vpack.c.bf16 %v1112, %v1108
        %v1145 = vpack.c.bf16 %v1113, %v1109
        %v1146 = vpack.c.bf16 %v1114, %v1110
        %v1147 = vpack.c.bf16 %v1119, %v1115
        %v1148 = vpack.c.bf16 %v1120, %v1116
        %v1149 = vpack.c.bf16 %v1121, %v1117
        %v1150 = vpack.c.bf16 %v1122, %v1118
        %v1151 = vld [vmem:[%s3] sm:$0xf]
        %v1152 = vld [vmem:[%s3 + $0x4] sm:$0xf]
        %v1153 = vld [vmem:[%s3 + $0x8] sm:$0xf]
        %v1154 = vld [vmem:[%s3 + $0xc] sm:$0xf]
        %v1155 = vld [vmem:[%s3 + $0x10] sm:$0xf]
        %v1156 = vld [vmem:[%s3 + $0x14] sm:$0xf]
        %v1157 = vld [vmem:[%s3 + $0x18] sm:$0xf]
        %v1158 = vld [vmem:[%s3 + $0x1c] sm:$0xf]
        %v1159 = vld [vmem:[%s3 + $0x20] sm:$0xf]
        %v1160 = vld [vmem:[%s3 + $0x24] sm:$0xf]
        %v1161 = vld [vmem:[%s3 + $0x28] sm:$0xf]
        %v1162 = vld [vmem:[%s3 + $0x2c] sm:$0xf]
        %v1163 = vld [vmem:[%s3 + $0x30] sm:$0xf]
        %v1164 = vld [vmem:[%s3 + $0x34] sm:$0xf]
        %v1165 = vld [vmem:[%s3 + $0x38] sm:$0xf]
        %v1166 = vld [vmem:[%s3 + $0x3c] sm:$0xf]
        %v1167 = vld [vmem:[%s3 + $0x40] sm:$0xf]
        %v1168 = vld [vmem:[%s3 + $0x44] sm:$0xf]
        %v1169 = vld [vmem:[%s3 + $0x48] sm:$0xf]
        %v1170 = vld [vmem:[%s3 + $0x4c] sm:$0xf]
        %v1171 = vld [vmem:[%s3 + $0x50] sm:$0xf]
        %v1172 = vld [vmem:[%s3 + $0x54] sm:$0xf]
        %v1173 = vld [vmem:[%s3 + $0x58] sm:$0xf]
        %v1174 = vld [vmem:[%s3 + $0x5c] sm:$0xf]
        %v1175 = vld [vmem:[%s3 + $0x60] sm:$0xf]
        %v1176 = vld [vmem:[%s3 + $0x64] sm:$0xf]
        %v1177 = vld [vmem:[%s3 + $0x68] sm:$0xf]
        %v1178 = vld [vmem:[%s3 + $0x6c] sm:$0xf]
        %v1179 = vld [vmem:[%s3 + $0x70] sm:$0xf]
        %v1180 = vld [vmem:[%s3 + $0x74] sm:$0xf]
        %v1181 = vld [vmem:[%s3 + $0x78] sm:$0xf]
        %v1182 = vld [vmem:[%s3 + $0x7c] sm:$0xf]
        %v1183 = vld [vmem:[%s3 + $0x80] sm:$0xf]
        %v1184 = vld [vmem:[%s3 + $0x84] sm:$0xf]
        %v1185 = vld [vmem:[%s3 + $0x88] sm:$0xf]
        %v1186 = vld [vmem:[%s3 + $0x8c] sm:$0xf]
        %v1187 = vld [vmem:[%s3 + $0x90] sm:$0xf]
        %v1188 = vld [vmem:[%s3 + $0x94] sm:$0xf]
        %v1189 = vld [vmem:[%s3 + $0x98] sm:$0xf]
        %v1190 = vld [vmem:[%s3 + $0x9c] sm:$0xf]
        %v1191 = vld [vmem:[%s3 + $0xa0] sm:$0xf]
        %v1192 = vld [vmem:[%s3 + $0xa4] sm:$0xf]
        %v1193 = vld [vmem:[%s3 + $0xa8] sm:$0xf]
        %v1194 = vld [vmem:[%s3 + $0xac] sm:$0xf]
        %v1195 = vld [vmem:[%s3 + $0xb0] sm:$0xf]
        %v1196 = vld [vmem:[%s3 + $0xb4] sm:$0xf]
        %v1197 = vld [vmem:[%s3 + $0xb8] sm:$0xf]
        %v1198 = vld [vmem:[%s3 + $0xbc] sm:$0xf]
        %v1199 = vld [vmem:[%s3 + $0xc0] sm:$0xf]
        %v1200 = vld [vmem:[%s3 + $0xc4] sm:$0xf]
        %v1201 = vld [vmem:[%s3 + $0xc8] sm:$0xf]
        %v1202 = vld [vmem:[%s3 + $0xcc] sm:$0xf]
        %v1203 = vld [vmem:[%s3 + $0xd0] sm:$0xf]
        %v1204 = vld [vmem:[%s3 + $0xd4] sm:$0xf]
        %v1205 = vld [vmem:[%s3 + $0xd8] sm:$0xf]
        %v1206 = vld [vmem:[%s3 + $0xdc] sm:$0xf]
        %v1207 = vld [vmem:[%s3 + $0xe0] sm:$0xf]
        %v1208 = vld [vmem:[%s3 + $0xe4] sm:$0xf]
        %v1209 = vld [vmem:[%s3 + $0xe8] sm:$0xf]
        %v1210 = vld [vmem:[%s3 + $0xec] sm:$0xf]
        %v1211 = vld [vmem:[%s3 + $0xf0] sm:$0xf]
        %v1212 = vld [vmem:[%s3 + $0xf4] sm:$0xf]
        %v1213 = vld [vmem:[%s3 + $0xf8] sm:$0xf]
        %v1214 = vld [vmem:[%s3 + $0xfc] sm:$0xf]
        %v1215 = vld [vmem:[%s4] sm:$0x1]
        %v1217 = vlaneseq
        %v1218 = vshrl.u32 %v1217, 7
        %v1219 = vsub.s32 0, %v1218
        %v1220 = vrot.slane %v1215, %v1219
        %v1286 = vunpack.c.l.b16 %v1151
        %v1287 = vunpack.c.l.b16 %v1152
        %v1288 = vunpack.c.l.b16 %v1153
        %v1289 = vunpack.c.l.b16 %v1154
        %v1290 = vunpack.c.l.b16 %v1155
        %v1291 = vunpack.c.l.b16 %v1156
        %v1292 = vunpack.c.l.b16 %v1157
        %v1293 = vunpack.c.l.b16 %v1158
        %v1294 = vunpack.c.l.b16 %v1159
        %v1295 = vunpack.c.l.b16 %v1160
        %v1296 = vunpack.c.l.b16 %v1161
        %v1297 = vunpack.c.l.b16 %v1162
        %v1298 = vunpack.c.l.b16 %v1163
        %v1299 = vunpack.c.l.b16 %v1164
        %v1300 = vunpack.c.l.b16 %v1165
        %v1301 = vunpack.c.l.b16 %v1166
        %v1302 = vunpack.c.l.b16 %v1167
        %v1303 = vunpack.c.l.b16 %v1168
        %v1304 = vunpack.c.l.b16 %v1169
        %v1305 = vunpack.c.l.b16 %v1170
        %v1306 = vunpack.c.l.b16 %v1171
        %v1307 = vunpack.c.l.b16 %v1172
        %v1308 = vunpack.c.l.b16 %v1173
        %v1309 = vunpack.c.l.b16 %v1174
        %v1310 = vunpack.c.l.b16 %v1175
        %v1311 = vunpack.c.l.b16 %v1176
        %v1312 = vunpack.c.l.b16 %v1177
        %v1313 = vunpack.c.l.b16 %v1178
        %v1314 = vunpack.c.l.b16 %v1179
        %v1315 = vunpack.c.l.b16 %v1180
        %v1316 = vunpack.c.l.b16 %v1181
        %v1317 = vunpack.c.l.b16 %v1182
        %v1318 = vunpack.c.l.b16 %v1183
        %v1319 = vunpack.c.l.b16 %v1184
        %v1320 = vunpack.c.l.b16 %v1185
        %v1321 = vunpack.c.l.b16 %v1186
        %v1322 = vunpack.c.l.b16 %v1187
        %v1323 = vunpack.c.l.b16 %v1188
        %v1324 = vunpack.c.l.b16 %v1189
        %v1325 = vunpack.c.l.b16 %v1190
        %v1326 = vunpack.c.l.b16 %v1191
        %v1327 = vunpack.c.l.b16 %v1192
        %v1328 = vunpack.c.l.b16 %v1193
        %v1329 = vunpack.c.l.b16 %v1194
        %v1330 = vunpack.c.l.b16 %v1195
        %v1331 = vunpack.c.l.b16 %v1196
        %v1332 = vunpack.c.l.b16 %v1197
        %v1333 = vunpack.c.l.b16 %v1198
        %v1334 = vunpack.c.l.b16 %v1199
        %v1335 = vunpack.c.l.b16 %v1200
        %v1336 = vunpack.c.l.b16 %v1201
        %v1337 = vunpack.c.l.b16 %v1202
        %v1338 = vunpack.c.l.b16 %v1203
        %v1339 = vunpack.c.l.b16 %v1204
        %v1340 = vunpack.c.l.b16 %v1205
        %v1341 = vunpack.c.l.b16 %v1206
        %v1342 = vunpack.c.l.b16 %v1207
        %v1343 = vunpack.c.l.b16 %v1208
        %v1344 = vunpack.c.l.b16 %v1209
        %v1345 = vunpack.c.l.b16 %v1210
        %v1346 = vunpack.c.l.b16 %v1211
        %v1347 = vunpack.c.l.b16 %v1212
        %v1348 = vunpack.c.l.b16 %v1213
        %v1349 = vunpack.c.l.b16 %v1214
        %v1350 = vpack.c.b16 %v1287, %v1286
        %v1351 = vpack.c.b16 %v1289, %v1288
        %v1352 = vpack.c.b16 %v1291, %v1290
        %v1353 = vpack.c.b16 %v1293, %v1292
        %v1354 = vpack.c.b16 %v1295, %v1294
        %v1355 = vpack.c.b16 %v1297, %v1296
        %v1356 = vpack.c.b16 %v1299, %v1298
        %v1357 = vpack.c.b16 %v1301, %v1300
        %v1358 = vpack.c.b16 %v1303, %v1302
        %v1359 = vpack.c.b16 %v1305, %v1304
        %v1360 = vpack.c.b16 %v1307, %v1306
        %v1361 = vpack.c.b16 %v1309, %v1308
        %v1362 = vpack.c.b16 %v1311, %v1310
        %v1363 = vpack.c.b16 %v1313, %v1312
        %v1364 = vpack.c.b16 %v1315, %v1314
        %v1365 = vpack.c.b16 %v1317, %v1316
        %v1366 = vpack.c.b16 %v1319, %v1318
        %v1367 = vpack.c.b16 %v1321, %v1320
        %v1368 = vpack.c.b16 %v1323, %v1322
        %v1369 = vpack.c.b16 %v1325, %v1324
        %v1370 = vpack.c.b16 %v1327, %v1326
        %v1371 = vpack.c.b16 %v1329, %v1328
        %v1372 = vpack.c.b16 %v1331, %v1330
        %v1373 = vpack.c.b16 %v1333, %v1332
        %v1374 = vpack.c.b16 %v1335, %v1334
        %v1375 = vpack.c.b16 %v1337, %v1336
        %v1376 = vpack.c.b16 %v1339, %v1338
        %v1377 = vpack.c.b16 %v1341, %v1340
        %v1378 = vpack.c.b16 %v1343, %v1342
        %v1379 = vpack.c.b16 %v1345, %v1344
        %v1380 = vpack.c.b16 %v1347, %v1346
        %v1381 = vpack.c.b16 %v1349, %v1348
        %1414 = vmatprep.subr.bf16.mxu0 0
        %1415 = vmatpush1.bf16.msra.mxu0 %v1357
        %1416 = vmatprep.subr.bf16.mxu0 0
        %1417 = vmatpush1.bf16.msra.mxu0 %v1356
        %1418 = vmatprep.subr.bf16.mxu0 0
        %1419 = vmatpush1.bf16.msra.mxu0 %v1355
        %1420 = vmatprep.subr.bf16.mxu0 0
        %1421 = vmatpush1.bf16.msra.mxu0 %v1354
        %1422 = vmatprep.subr.bf16.mxu0 0
        %1423 = vmatpush1.bf16.msra.mxu0 %v1353
        %1424 = vmatprep.subr.bf16.mxu0 0
        %1425 = vmatpush1.bf16.msra.mxu0 %v1352
        %1426 = vmatprep.subr.bf16.mxu0 0
        %1427 = vmatpush1.bf16.msra.mxu0 %v1351
        %1428 = vmatprep.subr.bf16.mxu0 0
        %1429 = vmatpush1.bf16.msra.mxu0 %v1350
        %1430 = vmatprep.subr.bf16.mxu0 0
        %1431 = vmatpush2.bf16.msra.mxu0 %v1365
        %1432 = vmatprep.subr.bf16.mxu0 0
        %1433 = vmatpush2.bf16.msra.mxu0 %v1364
        %1434 = vmatprep.subr.bf16.mxu0 0
        %1435 = vmatpush2.bf16.msra.mxu0 %v1363
        %1436 = vmatprep.subr.bf16.mxu0 0
        %1437 = vmatpush2.bf16.msra.mxu0 %v1362
        %1438 = vmatprep.subr.bf16.mxu0 0
        %1439 = vmatpush2.bf16.msra.mxu0 %v1361
        %1440 = vmatprep.subr.bf16.mxu0 0
        %1441 = vmatpush2.bf16.msra.mxu0 %v1360
        %1442 = vmatprep.subr.bf16.mxu0 0
        %1443 = vmatpush2.bf16.msra.mxu0 %v1359
        %1444 = vmatprep.subr.bf16.mxu0 0
        %1445 = vmatpush2.bf16.msra.mxu0 %v1358
        %1446 = vmatprep.mubr.bf16.mxu0 %v1124
        %1447 = vmatmul.mubr.bf16.gmra.mxu0 %v1123
        %v1448 = vpop.f32.mrf.mxu0
        %v1449 = vadd.f32 %v1220, %v1448
        %v1450 = vpop.f32.mrf.mxu0
        %v1451 = vpop.f32.mrf.mxu0
        %v1452 = vadd.f32 %v1220, %v1451
        %v1453 = vpop.f32.mrf.mxu0
        %1454 = vmatprep.mubr.bf16.mxu0 %v1128
        %1455 = vmatmul.mubr.bf16.gmra.mxu0 %v1127
        %v1456 = vpop.f32.mrf.mxu0
        %v1457 = vadd.f32 %v1220, %v1456
        %v1458 = vpop.f32.mrf.mxu0
        %v1459 = vpop.f32.mrf.mxu0
        %v1460 = vadd.f32 %v1220, %v1459
        %v1461 = vpop.f32.mrf.mxu0
        %1462 = vmatprep.mubr.bf16.mxu0 %v1132
        %1463 = vmatmul.mubr.bf16.gmra.mxu0 %v1131
        %v1464 = vpop.f32.mrf.mxu0
        %v1465 = vadd.f32 %v1220, %v1464
        %v1466 = vpop.f32.mrf.mxu0
        %v1467 = vpop.f32.mrf.mxu0
        %v1468 = vadd.f32 %v1220, %v1467
        %v1469 = vpop.f32.mrf.mxu0
        %1470 = vmatprep.mubr.bf16.mxu0 %v1136
        %1471 = vmatmul.mubr.bf16.gmra.mxu0 %v1135
        %v1472 = vpop.f32.mrf.mxu0
        %v1473 = vadd.f32 %v1220, %v1472
        %v1474 = vpop.f32.mrf.mxu0
        %v1475 = vpop.f32.mrf.mxu0
        %v1476 = vadd.f32 %v1220, %v1475
        %v1477 = vpop.f32.mrf.mxu0
        %1478 = vmatprep.mubr.bf16.mxu0 %v1140
        %1479 = vmatmul.mubr.bf16.gmra.mxu0 %v1139
        %v1480 = vpop.f32.mrf.mxu0
        %v1481 = vadd.f32 %v1220, %v1480
        %v1482 = vpop.f32.mrf.mxu0
        %v1483 = vpop.f32.mrf.mxu0
        %v1484 = vadd.f32 %v1220, %v1483
        %v1485 = vpop.f32.mrf.mxu0
        %1486 = vmatprep.mubr.bf16.mxu0 %v1144
        %1487 = vmatmul.mubr.bf16.gmra.mxu0 %v1143
        %v1488 = vpop.f32.mrf.mxu0
        %v1489 = vadd.f32 %v1220, %v1488
        %v1490 = vpop.f32.mrf.mxu0
        %v1491 = vpop.f32.mrf.mxu0
        %v1492 = vadd.f32 %v1220, %v1491
        %v1493 = vpop.f32.mrf.mxu0
        %1494 = vmatprep.mubr.bf16.mxu0 %v1148
        %1495 = vmatmul.mubr.bf16.gmra.mxu0 %v1147
        %v1496 = vpop.f32.mrf.mxu0
        %v1497 = vadd.f32 %v1220, %v1496
        %v1498 = vpop.f32.mrf.mxu0
        %v1499 = vpop.f32.mrf.mxu0
        %v1500 = vadd.f32 %v1220, %v1499
        %v1501 = vpop.f32.mrf.mxu0
        %1502 = vdwg.mxu0
        %1503 = vmatprep.subr.bf16.mxu0 0
        %1504 = vmatpush1.bf16.msra.mxu0 %v1373
        %1505 = vmatprep.subr.bf16.mxu0 0
        %1506 = vmatpush1.bf16.msra.mxu0 %v1372
        %1507 = vmatprep.subr.bf16.mxu0 0
        %1508 = vmatpush1.bf16.msra.mxu0 %v1371
        %1509 = vmatprep.subr.bf16.mxu0 0
        %1510 = vmatpush1.bf16.msra.mxu0 %v1370
        %1511 = vmatprep.subr.bf16.mxu0 0
        %1512 = vmatpush1.bf16.msra.mxu0 %v1369
        %1513 = vmatprep.subr.bf16.mxu0 0
        %1514 = vmatpush1.bf16.msra.mxu0 %v1368
        %1515 = vmatprep.subr.bf16.mxu0 0
        %1516 = vmatpush1.bf16.msra.mxu0 %v1367
        %1517 = vmatprep.subr.bf16.mxu0 0
        %1518 = vmatpush1.bf16.msra.mxu0 %v1366
        %1519 = vmatprep.subr.bf16.mxu0 0
        %1520 = vmatpush2.bf16.msra.mxu0 %v1381
        %1521 = vmatprep.subr.bf16.mxu0 0
        %1522 = vmatpush2.bf16.msra.mxu0 %v1380
        %1523 = vmatprep.subr.bf16.mxu0 0
        %1524 = vmatpush2.bf16.msra.mxu0 %v1379
        %1525 = vmatprep.subr.bf16.mxu0 0
        %1526 = vmatpush2.bf16.msra.mxu0 %v1378
        %1527 = vmatprep.subr.bf16.mxu0 0
        %1528 = vmatpush2.bf16.msra.mxu0 %v1377
        %1529 = vmatprep.subr.bf16.mxu0 0
        %1530 = vmatpush2.bf16.msra.mxu0 %v1376
        %1531 = vmatprep.subr.bf16.mxu0 0
        %1532 = vmatpush2.bf16.msra.mxu0 %v1375
        %1533 = vmatprep.subr.bf16.mxu0 0
        %1534 = vmatpush2.bf16.msra.mxu0 %v1374
        %1535 = vmatprep.mubr.bf16.mxu0 %v1126
        %1536 = vmatmul.mubr.bf16.gmra.mxu0 %v1125
        %v1537 = vpop.f32.mrf.mxu0
        %v1538 = vadd.f32 %v1449, %v1537
        %v1539 = vpop.f32.mrf.mxu0
        %v1540 = vpop.f32.mrf.mxu0
        %v1541 = vadd.f32 %v1452, %v1540
        %v1542 = vpop.f32.mrf.mxu0
        %1543 = vmatprep.mubr.bf16.mxu0 %v1130
        %1544 = vmatmul.mubr.bf16.gmra.mxu0 %v1129
        %v1545 = vpop.f32.mrf.mxu0
        %v1546 = vadd.f32 %v1457, %v1545
        %v1547 = vpop.f32.mrf.mxu0
        %v1548 = vpop.f32.mrf.mxu0
        %v1549 = vadd.f32 %v1460, %v1548
        %v1550 = vpop.f32.mrf.mxu0
        %1551 = vmatprep.mubr.bf16.mxu0 %v1134
        %1552 = vmatmul.mubr.bf16.gmra.mxu0 %v1133
        %v1553 = vpop.f32.mrf.mxu0
        %v1554 = vadd.f32 %v1465, %v1553
        %v1555 = vpop.f32.mrf.mxu0
        %v1556 = vpop.f32.mrf.mxu0
        %v1557 = vadd.f32 %v1468, %v1556
        %v1558 = vpop.f32.mrf.mxu0
        %1559 = vmatprep.mubr.bf16.mxu0 %v1138
        %1560 = vmatmul.mubr.bf16.gmra.mxu0 %v1137
        %v1561 = vpop.f32.mrf.mxu0
        %v1562 = vadd.f32 %v1473, %v1561
        %v1563 = vpop.f32.mrf.mxu0
        %v1564 = vpop.f32.mrf.mxu0
        %v1565 = vadd.f32 %v1476, %v1564
        %v1566 = vpop.f32.mrf.mxu0
        %1567 = vmatprep.mubr.bf16.mxu0 %v1142
        %1568 = vmatmul.mubr.bf16.gmra.mxu0 %v1141
        %v1569 = vpop.f32.mrf.mxu0
        %v1570 = vadd.f32 %v1481, %v1569
        %v1571 = vpop.f32.mrf.mxu0
        %v1572 = vpop.f32.mrf.mxu0
        %v1573 = vadd.f32 %v1484, %v1572
        %v1574 = vpop.f32.mrf.mxu0
        %1575 = vmatprep.mubr.bf16.mxu0 %v1146
        %1576 = vmatmul.mubr.bf16.gmra.mxu0 %v1145
        %v1577 = vpop.f32.mrf.mxu0
        %v1578 = vadd.f32 %v1489, %v1577
        %v1579 = vpop.f32.mrf.mxu0
        %v1580 = vpop.f32.mrf.mxu0
        %v1581 = vadd.f32 %v1492, %v1580
        %v1582 = vpop.f32.mrf.mxu0
        %1583 = vmatprep.mubr.bf16.mxu0 %v1150
        %1584 = vmatmul.mubr.bf16.gmra.mxu0 %v1149
        %v1585 = vpop.f32.mrf.mxu0
        %v1586 = vadd.f32 %v1497, %v1585
        %v1587 = vpop.f32.mrf.mxu0
        %v1588 = vpop.f32.mrf.mxu0
        %v1589 = vadd.f32 %v1500, %v1588
        %v1590 = vpop.f32.mrf.mxu0
        %1591 = vdwg.mxu0
        %v1592 = vmax.f32 %v1538, 0.0
        %v1593 = vmax.f32 %v1541, 0.0
        %v1594 = vmax.f32 %v1546, 0.0
        %v1595 = vmax.f32 %v1549, 0.0
        %v1596 = vmax.f32 %v1554, 0.0
        %v1597 = vmax.f32 %v1557, 0.0
        %v1598 = vmax.f32 %v1562, 0.0
        %v1599 = vmax.f32 %v1565, 0.0
        %v1600 = vmax.f32 %v1570, 0.0
        %v1601 = vmax.f32 %v1573, 0.0
        %v1602 = vmax.f32 %v1578, 0.0
        %v1603 = vmax.f32 %v1581, 0.0
        %v1604 = vmax.f32 %v1586, 0.0
        %v1605 = vmax.f32 %v1589, 0.0
        %v1606 = vpack.c.bf16 %v1593, %v1592
        %v1607 = vpack.c.bf16 %v1595, %v1594
        %v1608 = vpack.c.bf16 %v1597, %v1596
        %v1609 = vpack.c.bf16 %v1599, %v1598
        %v1610 = vpack.c.bf16 %v1601, %v1600
        %v1611 = vpack.c.bf16 %v1603, %v1602
        %v1612 = vpack.c.bf16 %v1605, %v1604
        %v1613 = vld [vmem:[#allocation2] sm:$0xff]
        %v1614 = vld [vmem:[#allocation2 + $0x8] sm:$0xff]
        %v1615 = vld [vmem:[#allocation2 + $0x10] sm:$0xff]
        %v1616 = vld [vmem:[#allocation2 + $0x18] sm:$0xff]
        %v1617 = vld [vmem:[#allocation2 + $0x20] sm:$0xff]
        %v1618 = vld [vmem:[#allocation2 + $0x28] sm:$0xff]
        %v1619 = vld [vmem:[#allocation2 + $0x30] sm:$0xff]
        %v1620 = vld [vmem:[#allocation2 + $0x38] sm:$0xff]
        %v1621 = vld [vmem:[#allocation2 + $0x40] sm:$0xff]
        %v1622 = vld [vmem:[#allocation2 + $0x48] sm:$0xff]
        %v1623 = vld [vmem:[#allocation2 + $0x50] sm:$0xff]
        %v1624 = vld [vmem:[#allocation2 + $0x58] sm:$0xff]
        %v1625 = vld [vmem:[#allocation2 + $0x60] sm:$0xff]
        %v1626 = vld [vmem:[#allocation2 + $0x68] sm:$0xff]
        %v1627 = vld [vmem:[#allocation2 + $0x70] sm:$0xff]
        %v1628 = vld [vmem:[#allocation2 + $0x78] sm:$0xff]
        %v1629 = vld [vmem:[#allocation2 + $0x80] sm:$0xff]
        %v1630 = vld [vmem:[#allocation2 + $0x88] sm:$0xff]
        %v1631 = vld [vmem:[#allocation2 + $0x90] sm:$0xff]
        %v1632 = vld [vmem:[#allocation2 + $0x98] sm:$0xff]
        %v1633 = vld [vmem:[#allocation2 + $0xa0] sm:$0xff]
        %v1634 = vld [vmem:[#allocation2 + $0xa8] sm:$0xff]
        %v1635 = vld [vmem:[#allocation2 + $0xb0] sm:$0xff]
        %v1636 = vld [vmem:[#allocation2 + $0xb8] sm:$0xff]
        %v1637 = vld [vmem:[#allocation2 + $0xc0] sm:$0xff]
        %v1638 = vld [vmem:[#allocation2 + $0xc8] sm:$0xff]
        %v1639 = vld [vmem:[#allocation2 + $0xd0] sm:$0xff]
        %v1640 = vld [vmem:[#allocation2 + $0xd8] sm:$0xff]
        %v1641 = vld [vmem:[#allocation2 + $0xe0] sm:$0xff]
        %v1642 = vld [vmem:[#allocation2 + $0xe8] sm:$0xff]
        %v1643 = vld [vmem:[#allocation2 + $0xf0] sm:$0xff]
        %v1644 = vld [vmem:[#allocation2 + $0xf8] sm:$0xff]
        %v1645 = vld [vmem:[%s6] sm:$0xf]
        %v1647 = vlaneseq
        %v1648 = vshrl.u32 %v1647, 7
        %v1649 = vsub.s32 0, %v1648
        %v1650 = vrot.slane %v1645, %v1649
        %v1651 = vlaneseq
        %v1652 = vshrl.u32 %v1651, 7
        %v1653 = vsub.s32 1, %v1652
        %v1654 = vrot.slane %v1645, %v1653
        %v1655 = vlaneseq
        %v1656 = vshrl.u32 %v1655, 7
        %v1657 = vsub.s32 2, %v1656
        %v1658 = vrot.slane %v1645, %v1657
        %v1659 = vlaneseq
        %v1660 = vshrl.u32 %v1659, 7
        %v1661 = vsub.s32 3, %v1660
        %v1662 = vrot.slane %v1645, %v1661
        %v1699 = vunpack.c.l.b16 %v1613
        %v1700 = vunpack.c.h.b16 %v1613
        %v1701 = vunpack.c.l.b16 %v1614
        %v1702 = vunpack.c.h.b16 %v1614
        %v1703 = vunpack.c.l.b16 %v1615
        %v1704 = vunpack.c.h.b16 %v1615
        %v1705 = vunpack.c.l.b16 %v1616
        %v1706 = vunpack.c.h.b16 %v1616
        %v1707 = vunpack.c.l.b16 %v1617
        %v1708 = vunpack.c.h.b16 %v1617
        %v1709 = vunpack.c.l.b16 %v1618
        %v1710 = vunpack.c.h.b16 %v1618
        %v1711 = vunpack.c.l.b16 %v1619
        %v1712 = vunpack.c.h.b16 %v1619
        %v1713 = vunpack.c.l.b16 %v1620
        %v1714 = vunpack.c.h.b16 %v1620
        %v1715 = vunpack.c.l.b16 %v1621
        %v1716 = vunpack.c.h.b16 %v1621
        %v1717 = vunpack.c.l.b16 %v1622
        %v1718 = vunpack.c.h.b16 %v1622
        %v1719 = vunpack.c.l.b16 %v1623
        %v1720 = vunpack.c.h.b16 %v1623
        %v1721 = vunpack.c.l.b16 %v1624
        %v1722 = vunpack.c.h.b16 %v1624
        %v1723 = vunpack.c.l.b16 %v1625
        %v1724 = vunpack.c.h.b16 %v1625
        %v1725 = vunpack.c.l.b16 %v1626
        %v1726 = vunpack.c.h.b16 %v1626
        %v1727 = vunpack.c.l.b16 %v1627
        %v1728 = vunpack.c.h.b16 %v1627
        %v1729 = vunpack.c.l.b16 %v1628
        %v1730 = vunpack.c.h.b16 %v1628
        %v1731 = vunpack.c.l.b16 %v1629
        %v1732 = vunpack.c.h.b16 %v1629
        %v1733 = vunpack.c.l.b16 %v1630
        %v1734 = vunpack.c.h.b16 %v1630
        %v1735 = vunpack.c.l.b16 %v1631
        %v1736 = vunpack.c.h.b16 %v1631
        %v1737 = vunpack.c.l.b16 %v1632
        %v1738 = vunpack.c.h.b16 %v1632
        %v1739 = vunpack.c.l.b16 %v1633
        %v1740 = vunpack.c.h.b16 %v1633
        %v1741 = vunpack.c.l.b16 %v1634
        %v1742 = vunpack.c.h.b16 %v1634
        %v1743 = vunpack.c.l.b16 %v1635
        %v1744 = vunpack.c.h.b16 %v1635
        %v1745 = vunpack.c.l.b16 %v1636
        %v1746 = vunpack.c.h.b16 %v1636
        %v1747 = vunpack.c.l.b16 %v1637
        %v1748 = vunpack.c.h.b16 %v1637
        %v1749 = vunpack.c.l.b16 %v1638
        %v1750 = vunpack.c.h.b16 %v1638
        %v1751 = vunpack.c.l.b16 %v1639
        %v1752 = vunpack.c.h.b16 %v1639
        %v1753 = vunpack.c.l.b16 %v1640
        %v1754 = vunpack.c.h.b16 %v1640
        %v1755 = vunpack.c.l.b16 %v1641
        %v1756 = vunpack.c.h.b16 %v1641
        %v1757 = vunpack.c.l.b16 %v1642
        %v1758 = vunpack.c.h.b16 %v1642
        %v1759 = vunpack.c.l.b16 %v1643
        %v1760 = vunpack.c.h.b16 %v1643
        %v1761 = vunpack.c.l.b16 %v1644
        %v1762 = vunpack.c.h.b16 %v1644
        %v1763 = vpack.c.b16 %v1703, %v1699
        %v1764 = vpack.c.b16 %v1704, %v1700
        %v1765 = vpack.c.b16 %v1705, %v1701
        %v1766 = vpack.c.b16 %v1706, %v1702
        %v1767 = vpack.c.b16 %v1711, %v1707
        %v1768 = vpack.c.b16 %v1712, %v1708
        %v1769 = vpack.c.b16 %v1713, %v1709
        %v1770 = vpack.c.b16 %v1714, %v1710
        %v1771 = vpack.c.b16 %v1719, %v1715
        %v1772 = vpack.c.b16 %v1720, %v1716
        %v1773 = vpack.c.b16 %v1721, %v1717
        %v1774 = vpack.c.b16 %v1722, %v1718
        %v1775 = vpack.c.b16 %v1727, %v1723
        %v1776 = vpack.c.b16 %v1728, %v1724
        %v1777 = vpack.c.b16 %v1729, %v1725
        %v1778 = vpack.c.b16 %v1730, %v1726
        %v1779 = vpack.c.b16 %v1735, %v1731
        %v1780 = vpack.c.b16 %v1736, %v1732
        %v1781 = vpack.c.b16 %v1737, %v1733
        %v1782 = vpack.c.b16 %v1738, %v1734
        %v1783 = vpack.c.b16 %v1743, %v1739
        %v1784 = vpack.c.b16 %v1744, %v1740
        %v1785 = vpack.c.b16 %v1745, %v1741
        %v1786 = vpack.c.b16 %v1746, %v1742
        %v1787 = vpack.c.b16 %v1751, %v1747
        %v1788 = vpack.c.b16 %v1752, %v1748
        %v1789 = vpack.c.b16 %v1753, %v1749
        %v1790 = vpack.c.b16 %v1754, %v1750
        %v1791 = vpack.c.b16 %v1759, %v1755
        %v1792 = vpack.c.b16 %v1760, %v1756
        %v1793 = vpack.c.b16 %v1761, %v1757
        %v1794 = vpack.c.b16 %v1762, %v1758
        %1827 = vmatprep.subr.bf16.mxu0 %v1792
        %1828 = vmatpush1.bf16.msra.mxu0 %v1791
        %1829 = vmatprep.subr.bf16.mxu0 %v1788
        %1830 = vmatpush1.bf16.msra.mxu0 %v1787
        %1831 = vmatprep.subr.bf16.mxu0 %v1784
        %1832 = vmatpush1.bf16.msra.mxu0 %v1783
        %1833 = vmatprep.subr.bf16.mxu0 %v1780
        %1834 = vmatpush1.bf16.msra.mxu0 %v1779
        %1835 = vmatprep.subr.bf16.mxu0 %v1776
        %1836 = vmatpush1.bf16.msra.mxu0 %v1775
        %1837 = vmatprep.subr.bf16.mxu0 %v1772
        %1838 = vmatpush1.bf16.msra.mxu0 %v1771
        %1839 = vmatprep.subr.bf16.mxu0 %v1768
        %1840 = vmatpush1.bf16.msra.mxu0 %v1767
        %1841 = vmatprep.subr.bf16.mxu0 %v1764
        %1842 = vmatpush1.bf16.msra.mxu0 %v1763
        %1843 = vmatprep.subr.bf16.mxu0 0
        %1844 = vmatpush2.bf16.msra.mxu0 0
        %1845 = vmatprep.subr.bf16.mxu0 0
        %1846 = vmatpush2.bf16.msra.mxu0 0
        %1847 = vmatprep.subr.bf16.mxu0 0
        %1848 = vmatpush2.bf16.msra.mxu0 0
        %1849 = vmatprep.subr.bf16.mxu0 0
        %1850 = vmatpush2.bf16.msra.mxu0 0
        %1851 = vmatprep.subr.bf16.mxu0 0
        %1852 = vmatpush2.bf16.msra.mxu0 0
        %1853 = vmatprep.subr.bf16.mxu0 0
        %1854 = vmatpush2.bf16.msra.mxu0 0
        %1855 = vmatprep.subr.bf16.mxu0 0
        %1856 = vmatpush2.bf16.msra.mxu0 0
        %1857 = vmatprep.subr.bf16.mxu0 0
        %1858 = vmatpush2.bf16.msra.mxu0 0
        %1859 = vmatprep.mubr.bf16.mxu0 0
        %1860 = vmatmul.mubr.bf16.gmra.mxu0 %v1606
        %v1861 = vpop.f32.mrf.mxu0
        %v1862 = vadd.f32 %v1650, %v1861
        %v1863 = vpop.f32.mrf.mxu0
        %v1864 = vadd.f32 %v1654, %v1863
        %v1865 = vpop.f32.mrf.mxu0
        %v1866 = vadd.f32 %v1650, %v1865
        %v1867 = vpop.f32.mrf.mxu0
        %v1868 = vadd.f32 %v1654, %v1867
        %1869 = vmatprep.mubr.bf16.mxu0 0
        %1870 = vmatmul.mubr.bf16.gmra.mxu0 %v1607
        %v1871 = vpop.f32.mrf.mxu0
        %v1872 = vadd.f32 %v1650, %v1871
        %v1873 = vpop.f32.mrf.mxu0
        %v1874 = vadd.f32 %v1654, %v1873
        %v1875 = vpop.f32.mrf.mxu0
        %v1876 = vadd.f32 %v1650, %v1875
        %v1877 = vpop.f32.mrf.mxu0
        %v1878 = vadd.f32 %v1654, %v1877
        %1879 = vmatprep.mubr.bf16.mxu0 0
        %1880 = vmatmul.mubr.bf16.gmra.mxu0 %v1608
        %v1881 = vpop.f32.mrf.mxu0
        %v1882 = vadd.f32 %v1650, %v1881
        %v1883 = vpop.f32.mrf.mxu0
        %v1884 = vadd.f32 %v1654, %v1883
        %v1885 = vpop.f32.mrf.mxu0
        %v1886 = vadd.f32 %v1650, %v1885
        %v1887 = vpop.f32.mrf.mxu0
        %v1888 = vadd.f32 %v1654, %v1887
        %1889 = vmatprep.mubr.bf16.mxu0 0
        %1890 = vmatmul.mubr.bf16.gmra.mxu0 %v1609
        %v1891 = vpop.f32.mrf.mxu0
        %v1892 = vadd.f32 %v1650, %v1891
        %v1893 = vpop.f32.mrf.mxu0
        %v1894 = vadd.f32 %v1654, %v1893
        %v1895 = vpop.f32.mrf.mxu0
        %v1896 = vadd.f32 %v1650, %v1895
        %v1897 = vpop.f32.mrf.mxu0
        %v1898 = vadd.f32 %v1654, %v1897
        %1899 = vmatprep.mubr.bf16.mxu0 0
        %1900 = vmatmul.mubr.bf16.gmra.mxu0 %v1610
        %v1901 = vpop.f32.mrf.mxu0
        %v1902 = vadd.f32 %v1650, %v1901
        %v1903 = vpop.f32.mrf.mxu0
        %v1904 = vadd.f32 %v1654, %v1903
        %v1905 = vpop.f32.mrf.mxu0
        %v1906 = vadd.f32 %v1650, %v1905
        %v1907 = vpop.f32.mrf.mxu0
        %v1908 = vadd.f32 %v1654, %v1907
        %1909 = vmatprep.mubr.bf16.mxu0 0
        %1910 = vmatmul.mubr.bf16.gmra.mxu0 %v1611
        %v1911 = vpop.f32.mrf.mxu0
        %v1912 = vadd.f32 %v1650, %v1911
        %v1913 = vpop.f32.mrf.mxu0
        %v1914 = vadd.f32 %v1654, %v1913
        %v1915 = vpop.f32.mrf.mxu0
        %v1916 = vadd.f32 %v1650, %v1915
        %v1917 = vpop.f32.mrf.mxu0
        %v1918 = vadd.f32 %v1654, %v1917
        %1919 = vmatprep.mubr.bf16.mxu0 0
        %1920 = vmatmul.mubr.bf16.gmra.mxu0 %v1612
        %v1921 = vpop.f32.mrf.mxu0
        %v1922 = vadd.f32 %v1650, %v1921
        %v1923 = vpop.f32.mrf.mxu0
        %v1924 = vadd.f32 %v1654, %v1923
        %v1925 = vpop.f32.mrf.mxu0
        %v1926 = vadd.f32 %v1650, %v1925
        %v1927 = vpop.f32.mrf.mxu0
        %v1928 = vadd.f32 %v1654, %v1927
        %1929 = vdwg.mxu0
        %1930 = vmatprep.subr.bf16.mxu0 %v1794
        %1931 = vmatpush1.bf16.msra.mxu0 %v1793
        %1932 = vmatprep.subr.bf16.mxu0 %v1790
        %1933 = vmatpush1.bf16.msra.mxu0 %v1789
        %1934 = vmatprep.subr.bf16.mxu0 %v1786
        %1935 = vmatpush1.bf16.msra.mxu0 %v1785
        %1936 = vmatprep.subr.bf16.mxu0 %v1782
        %1937 = vmatpush1.bf16.msra.mxu0 %v1781
        %1938 = vmatprep.subr.bf16.mxu0 %v1778
        %1939 = vmatpush1.bf16.msra.mxu0 %v1777
        %1940 = vmatprep.subr.bf16.mxu0 %v1774
        %1941 = vmatpush1.bf16.msra.mxu0 %v1773
        %1942 = vmatprep.subr.bf16.mxu0 %v1770
        %1943 = vmatpush1.bf16.msra.mxu0 %v1769
        %1944 = vmatprep.subr.bf16.mxu0 %v1766
        %1945 = vmatpush1.bf16.msra.mxu0 %v1765
        %1946 = vmatprep.subr.bf16.mxu0 0
        %1947 = vmatpush2.bf16.msra.mxu0 0
        %1948 = vmatprep.subr.bf16.mxu0 0
        %1949 = vmatpush2.bf16.msra.mxu0 0
        %1950 = vmatprep.subr.bf16.mxu0 0
        %1951 = vmatpush2.bf16.msra.mxu0 0
        %1952 = vmatprep.subr.bf16.mxu0 0
        %1953 = vmatpush2.bf16.msra.mxu0 0
        %1954 = vmatprep.subr.bf16.mxu0 0
        %1955 = vmatpush2.bf16.msra.mxu0 0
        %1956 = vmatprep.subr.bf16.mxu0 0
        %1957 = vmatpush2.bf16.msra.mxu0 0
        %1958 = vmatprep.subr.bf16.mxu0 0
        %1959 = vmatpush2.bf16.msra.mxu0 0
        %1960 = vmatprep.subr.bf16.mxu0 0
        %1961 = vmatpush2.bf16.msra.mxu0 0
        %1962 = vmatprep.mubr.bf16.mxu0 0
        %1963 = vmatmul.mubr.bf16.gmra.mxu0 %v1606
        %v1964 = vpop.f32.mrf.mxu0
        %v1965 = vadd.f32 %v1658, %v1964
        %v1966 = vpop.f32.mrf.mxu0
        %v1967 = vadd.f32 %v1662, %v1966
        %v1968 = vpop.f32.mrf.mxu0
        %v1969 = vadd.f32 %v1658, %v1968
        %v1970 = vpop.f32.mrf.mxu0
        %v1971 = vadd.f32 %v1662, %v1970
        %1972 = vmatprep.mubr.bf16.mxu0 0
        %1973 = vmatmul.mubr.bf16.gmra.mxu0 %v1607
        %v1974 = vpop.f32.mrf.mxu0
        %v1975 = vadd.f32 %v1658, %v1974
        %v1976 = vpop.f32.mrf.mxu0
        %v1977 = vadd.f32 %v1662, %v1976
        %v1978 = vpop.f32.mrf.mxu0
        %v1979 = vadd.f32 %v1658, %v1978
        %v1980 = vpop.f32.mrf.mxu0
        %v1981 = vadd.f32 %v1662, %v1980
        %1982 = vmatprep.mubr.bf16.mxu0 0
        %1983 = vmatmul.mubr.bf16.gmra.mxu0 %v1608
        %v1984 = vpop.f32.mrf.mxu0
        %v1985 = vadd.f32 %v1658, %v1984
        %v1986 = vpop.f32.mrf.mxu0
        %v1987 = vadd.f32 %v1662, %v1986
        %v1988 = vpop.f32.mrf.mxu0
        %v1989 = vadd.f32 %v1658, %v1988
        %v1990 = vpop.f32.mrf.mxu0
        %v1991 = vadd.f32 %v1662, %v1990
        %1992 = vmatprep.mubr.bf16.mxu0 0
        %1993 = vmatmul.mubr.bf16.gmra.mxu0 %v1609
        %v1994 = vpop.f32.mrf.mxu0
        %v1995 = vadd.f32 %v1658, %v1994
        %v1996 = vpop.f32.mrf.mxu0
        %v1997 = vadd.f32 %v1662, %v1996
        %v1998 = vpop.f32.mrf.mxu0
        %v1999 = vadd.f32 %v1658, %v1998
        %v2000 = vpop.f32.mrf.mxu0
        %v2001 = vadd.f32 %v1662, %v2000
        %2002 = vmatprep.mubr.bf16.mxu0 0
        %2003 = vmatmul.mubr.bf16.gmra.mxu0 %v1610
        %v2004 = vpop.f32.mrf.mxu0
        %v2005 = vadd.f32 %v1658, %v2004
        %v2006 = vpop.f32.mrf.mxu0
        %v2007 = vadd.f32 %v1662, %v2006
        %v2008 = vpop.f32.mrf.mxu0
        %v2009 = vadd.f32 %v1658, %v2008
        %v2010 = vpop.f32.mrf.mxu0
        %v2011 = vadd.f32 %v1662, %v2010
        %2012 = vmatprep.mubr.bf16.mxu0 0
        %2013 = vmatmul.mubr.bf16.gmra.mxu0 %v1611
        %v2014 = vpop.f32.mrf.mxu0
        %v2015 = vadd.f32 %v1658, %v2014
        %v2016 = vpop.f32.mrf.mxu0
        %v2017 = vadd.f32 %v1662, %v2016
        %v2018 = vpop.f32.mrf.mxu0
        %v2019 = vadd.f32 %v1658, %v2018
        %v2020 = vpop.f32.mrf.mxu0
        %v2021 = vadd.f32 %v1662, %v2020
        %2022 = vmatprep.mubr.bf16.mxu0 0
        %2023 = vmatmul.mubr.bf16.gmra.mxu0 %v1612
        %v2024 = vpop.f32.mrf.mxu0
        %v2025 = vadd.f32 %v1658, %v2024
        %v2026 = vpop.f32.mrf.mxu0
        %v2027 = vadd.f32 %v1662, %v2026
        %v2028 = vpop.f32.mrf.mxu0
        %v2029 = vadd.f32 %v1658, %v2028
        %v2030 = vpop.f32.mrf.mxu0
        %v2031 = vadd.f32 %v1662, %v2030
        %2032 = vdwg.mxu0
        %v2033 = vmax.f32 %v1862, 0.0
        %v2034 = vmax.f32 %v1864, 0.0
        %v2035 = vmax.f32 %v1965, 0.0
        %v2036 = vmax.f32 %v1967, 0.0
        %v2037 = vmax.f32 %v1866, 0.0
        %v2038 = vmax.f32 %v1868, 0.0
        %v2039 = vmax.f32 %v1969, 0.0
        %v2040 = vmax.f32 %v1971, 0.0
        %v2041 = vmax.f32 %v1872, 0.0
        %v2042 = vmax.f32 %v1874, 0.0
        %v2043 = vmax.f32 %v1975, 0.0
        %v2044 = vmax.f32 %v1977, 0.0
        %v2045 = vmax.f32 %v1876, 0.0
        %v2046 = vmax.f32 %v1878, 0.0
        %v2047 = vmax.f32 %v1979, 0.0
        %v2048 = vmax.f32 %v1981, 0.0
        %v2049 = vmax.f32 %v1882, 0.0
        %v2050 = vmax.f32 %v1884, 0.0
        %v2051 = vmax.f32 %v1985, 0.0
        %v2052 = vmax.f32 %v1987, 0.0
        %v2053 = vmax.f32 %v1886, 0.0
        %v2054 = vmax.f32 %v1888, 0.0
        %v2055 = vmax.f32 %v1989, 0.0
        %v2056 = vmax.f32 %v1991, 0.0
        %v2057 = vmax.f32 %v1892, 0.0
        %v2058 = vmax.f32 %v1894, 0.0
        %v2059 = vmax.f32 %v1995, 0.0
        %v2060 = vmax.f32 %v1997, 0.0
        %v2061 = vmax.f32 %v1896, 0.0
        %v2062 = vmax.f32 %v1898, 0.0
        %v2063 = vmax.f32 %v1999, 0.0
        %v2064 = vmax.f32 %v2001, 0.0
        %v2065 = vmax.f32 %v1902, 0.0
        %v2066 = vmax.f32 %v1904, 0.0
        %v2067 = vmax.f32 %v2005, 0.0
        %v2068 = vmax.f32 %v2007, 0.0
        %v2069 = vmax.f32 %v1906, 0.0
        %v2070 = vmax.f32 %v1908, 0.0
        %v2071 = vmax.f32 %v2009, 0.0
        %v2072 = vmax.f32 %v2011, 0.0
        %v2073 = vmax.f32 %v1912, 0.0
        %v2074 = vmax.f32 %v1914, 0.0
        %v2075 = vmax.f32 %v2015, 0.0
        %v2076 = vmax.f32 %v2017, 0.0
        %v2077 = vmax.f32 %v1916, 0.0
        %v2078 = vmax.f32 %v1918, 0.0
        %v2079 = vmax.f32 %v2019, 0.0
        %v2080 = vmax.f32 %v2021, 0.0
        %v2081 = vmax.f32 %v1922, 0.0
        %v2082 = vmax.f32 %v1924, 0.0
        %v2083 = vmax.f32 %v2025, 0.0
        %v2084 = vmax.f32 %v2027, 0.0
        %v2085 = vmax.f32 %v1926, 0.0
        %v2086 = vmax.f32 %v1928, 0.0
        %v2087 = vmax.f32 %v2029, 0.0
        %v2088 = vmax.f32 %v2031, 0.0
        %v2089 = vpack.c.bf16 %v2037, %v2033
        %v2090 = vpack.c.bf16 %v2038, %v2034
        %v2091 = vpack.c.bf16 %v2039, %v2035
        %v2092 = vpack.c.bf16 %v2040, %v2036
        %v2093 = vpack.c.bf16 %v2045, %v2041
        %v2094 = vpack.c.bf16 %v2046, %v2042
        %v2095 = vpack.c.bf16 %v2047, %v2043
        %v2096 = vpack.c.bf16 %v2048, %v2044
        %v2097 = vpack.c.bf16 %v2053, %v2049
        %v2098 = vpack.c.bf16 %v2054, %v2050
        %v2099 = vpack.c.bf16 %v2055, %v2051
        %v2100 = vpack.c.bf16 %v2056, %v2052
        %v2101 = vpack.c.bf16 %v2061, %v2057
        %v2102 = vpack.c.bf16 %v2062, %v2058
        %v2103 = vpack.c.bf16 %v2063, %v2059
        %v2104 = vpack.c.bf16 %v2064, %v2060
        %v2105 = vpack.c.bf16 %v2069, %v2065
        %v2106 = vpack.c.bf16 %v2070, %v2066
        %v2107 = vpack.c.bf16 %v2071, %v2067
        %v2108 = vpack.c.bf16 %v2072, %v2068
        %v2109 = vpack.c.bf16 %v2077, %v2073
        %v2110 = vpack.c.bf16 %v2078, %v2074
        %v2111 = vpack.c.bf16 %v2079, %v2075
        %v2112 = vpack.c.bf16 %v2080, %v2076
        %v2113 = vpack.c.bf16 %v2085, %v2081
        %v2114 = vpack.c.bf16 %v2086, %v2082
        %v2115 = vpack.c.bf16 %v2087, %v2083
        %v2116 = vpack.c.bf16 %v2088, %v2084
        %v2117 = vld [vmem:[#allocation4] sm:$0xff]
        %v2118 = vld [vmem:[#allocation4 + $0x8] sm:$0xff]
        %v2119 = vld [vmem:[#allocation4 + $0x10] sm:$0xff]
        %v2120 = vld [vmem:[#allocation4 + $0x18] sm:$0xff]
        %v2121 = vld [vmem:[#allocation4 + $0x20] sm:$0xff]
        %v2122 = vld [vmem:[#allocation4 + $0x28] sm:$0xff]
        %v2123 = vld [vmem:[#allocation4 + $0x30] sm:$0xff]
        %v2124 = vld [vmem:[#allocation4 + $0x38] sm:$0xff]
        %v2125 = vld [vmem:[#allocation4 + $0x40] sm:$0xff]
        %v2126 = vld [vmem:[#allocation4 + $0x48] sm:$0xff]
        %v2127 = vld [vmem:[#allocation4 + $0x50] sm:$0xff]
        %v2128 = vld [vmem:[#allocation4 + $0x58] sm:$0xff]
        %v2129 = vld [vmem:[#allocation4 + $0x60] sm:$0xff]
        %v2130 = vld [vmem:[#allocation4 + $0x68] sm:$0xff]
        %v2131 = vld [vmem:[#allocation4 + $0x70] sm:$0xff]
        %v2132 = vld [vmem:[#allocation4 + $0x78] sm:$0xff]
        %v2133 = vld [vmem:[#allocation4 + $0x80] sm:$0xff]
        %v2134 = vld [vmem:[#allocation4 + $0x88] sm:$0xff]
        %v2135 = vld [vmem:[#allocation4 + $0x90] sm:$0xff]
        %v2136 = vld [vmem:[#allocation4 + $0x98] sm:$0xff]
        %v2137 = vld [vmem:[#allocation4 + $0xa0] sm:$0xff]
        %v2138 = vld [vmem:[#allocation4 + $0xa8] sm:$0xff]
        %v2139 = vld [vmem:[#allocation4 + $0xb0] sm:$0xff]
        %v2140 = vld [vmem:[#allocation4 + $0xb8] sm:$0xff]
        %v2141 = vld [vmem:[#allocation4 + $0xc0] sm:$0xff]
        %v2142 = vld [vmem:[#allocation4 + $0xc8] sm:$0xff]
        %v2143 = vld [vmem:[#allocation4 + $0xd0] sm:$0xff]
        %v2144 = vld [vmem:[#allocation4 + $0xd8] sm:$0xff]
        %v2145 = vld [vmem:[#allocation4 + $0xe0] sm:$0xff]
        %v2146 = vld [vmem:[#allocation4 + $0xe8] sm:$0xff]
        %v2147 = vld [vmem:[#allocation4 + $0xf0] sm:$0xff]
        %v2148 = vld [vmem:[#allocation4 + $0xf8] sm:$0xff]
        %v2149 = vld [vmem:[#allocation4 + $0x100] sm:$0xff]
        %v2150 = vld [vmem:[#allocation4 + $0x108] sm:$0xff]
        %v2151 = vld [vmem:[#allocation4 + $0x110] sm:$0xff]
        %v2152 = vld [vmem:[#allocation4 + $0x118] sm:$0xff]
        %v2153 = vld [vmem:[#allocation4 + $0x120] sm:$0xff]
        %v2154 = vld [vmem:[#allocation4 + $0x128] sm:$0xff]
        %v2155 = vld [vmem:[#allocation4 + $0x130] sm:$0xff]
        %v2156 = vld [vmem:[#allocation4 + $0x138] sm:$0xff]
        %v2157 = vld [vmem:[#allocation4 + $0x140] sm:$0xff]
        %v2158 = vld [vmem:[#allocation4 + $0x148] sm:$0xff]
        %v2159 = vld [vmem:[#allocation4 + $0x150] sm:$0xff]
        %v2160 = vld [vmem:[#allocation4 + $0x158] sm:$0xff]
        %v2161 = vld [vmem:[#allocation4 + $0x160] sm:$0xff]
        %v2162 = vld [vmem:[#allocation4 + $0x168] sm:$0xff]
        %v2163 = vld [vmem:[#allocation4 + $0x170] sm:$0xff]
        %v2164 = vld [vmem:[#allocation4 + $0x178] sm:$0xff]
        %v2165 = vld [vmem:[#allocation4 + $0x180] sm:$0xff]
        %v2166 = vld [vmem:[#allocation4 + $0x188] sm:$0xff]
        %v2167 = vld [vmem:[#allocation4 + $0x190] sm:$0xff]
        %v2168 = vld [vmem:[#allocation4 + $0x198] sm:$0xff]
        %v2169 = vld [vmem:[#allocation4 + $0x1a0] sm:$0xff]
        %v2170 = vld [vmem:[#allocation4 + $0x1a8] sm:$0xff]
        %v2171 = vld [vmem:[#allocation4 + $0x1b0] sm:$0xff]
        %v2172 = vld [vmem:[#allocation4 + $0x1b8] sm:$0xff]
        %v2173 = vld [vmem:[#allocation4 + $0x1c0] sm:$0xff]
        %v2174 = vld [vmem:[#allocation4 + $0x1c8] sm:$0xff]
        %v2175 = vld [vmem:[#allocation4 + $0x1d0] sm:$0xff]
        %v2176 = vld [vmem:[#allocation4 + $0x1d8] sm:$0xff]
        %v2177 = vld [vmem:[#allocation4 + $0x1e0] sm:$0xff]
        %v2178 = vld [vmem:[#allocation4 + $0x1e8] sm:$0xff]
        %v2179 = vld [vmem:[#allocation4 + $0x1f0] sm:$0xff]
        %v2180 = vld [vmem:[#allocation4 + $0x1f8] sm:$0xff]
        %v2181 = vld [vmem:[%s8] sm:$0x3]
        %v2183 = vlaneseq
        %v2184 = vshrl.u32 %v2183, 7
        %v2185 = vsub.s32 0, %v2184
        %v2186 = vrot.slane %v2181, %v2185
        %v2187 = vlaneseq
        %v2188 = vshrl.u32 %v2187, 7
        %v2189 = vsub.s32 1, %v2188
        %v2190 = vrot.slane %v2181, %v2189
        %v2257 = vunpack.c.l.b16 %v2117
        %v2258 = vunpack.c.h.b16 %v2117
        %v2259 = vunpack.c.l.b16 %v2118
        %v2260 = vunpack.c.h.b16 %v2118
        %v2261 = vunpack.c.l.b16 %v2119
        %v2262 = vunpack.c.h.b16 %v2119
        %v2263 = vunpack.c.l.b16 %v2120
        %v2264 = vunpack.c.h.b16 %v2120
        %v2265 = vunpack.c.l.b16 %v2121
        %v2266 = vunpack.c.h.b16 %v2121
        %v2267 = vunpack.c.l.b16 %v2122
        %v2268 = vunpack.c.h.b16 %v2122
        %v2269 = vunpack.c.l.b16 %v2123
        %v2270 = vunpack.c.h.b16 %v2123
        %v2271 = vunpack.c.l.b16 %v2124
        %v2272 = vunpack.c.h.b16 %v2124
        %v2273 = vunpack.c.l.b16 %v2125
        %v2274 = vunpack.c.h.b16 %v2125
        %v2275 = vunpack.c.l.b16 %v2126
        %v2276 = vunpack.c.h.b16 %v2126
        %v2277 = vunpack.c.l.b16 %v2127
        %v2278 = vunpack.c.h.b16 %v2127
        %v2279 = vunpack.c.l.b16 %v2128
        %v2280 = vunpack.c.h.b16 %v2128
        %v2281 = vunpack.c.l.b16 %v2129
        %v2282 = vunpack.c.h.b16 %v2129
        %v2283 = vunpack.c.l.b16 %v2130
        %v2284 = vunpack.c.h.b16 %v2130
        %v2285 = vunpack.c.l.b16 %v2131
        %v2286 = vunpack.c.h.b16 %v2131
        %v2287 = vunpack.c.l.b16 %v2132
        %v2288 = vunpack.c.h.b16 %v2132
        %v2289 = vunpack.c.l.b16 %v2133
        %v2290 = vunpack.c.h.b16 %v2133
        %v2291 = vunpack.c.l.b16 %v2134
        %v2292 = vunpack.c.h.b16 %v2134
        %v2293 = vunpack.c.l.b16 %v2135
        %v2294 = vunpack.c.h.b16 %v2135
        %v2295 = vunpack.c.l.b16 %v2136
        %v2296 = vunpack.c.h.b16 %v2136
        %v2297 = vunpack.c.l.b16 %v2137
        %v2298 = vunpack.c.h.b16 %v2137
        %v2299 = vunpack.c.l.b16 %v2138
        %v2300 = vunpack.c.h.b16 %v2138
        %v2301 = vunpack.c.l.b16 %v2139
        %v2302 = vunpack.c.h.b16 %v2139
        %v2303 = vunpack.c.l.b16 %v2140
        %v2304 = vunpack.c.h.b16 %v2140
        %v2305 = vunpack.c.l.b16 %v2141
        %v2306 = vunpack.c.h.b16 %v2141
        %v2307 = vunpack.c.l.b16 %v2142
        %v2308 = vunpack.c.h.b16 %v2142
        %v2309 = vunpack.c.l.b16 %v2143
        %v2310 = vunpack.c.h.b16 %v2143
        %v2311 = vunpack.c.l.b16 %v2144
        %v2312 = vunpack.c.h.b16 %v2144
        %v2313 = vunpack.c.l.b16 %v2145
        %v2314 = vunpack.c.h.b16 %v2145
        %v2315 = vunpack.c.l.b16 %v2146
        %v2316 = vunpack.c.h.b16 %v2146
        %v2317 = vunpack.c.l.b16 %v2147
        %v2318 = vunpack.c.h.b16 %v2147
        %v2319 = vunpack.c.l.b16 %v2148
        %v2320 = vunpack.c.h.b16 %v2148
        %v2321 = vunpack.c.l.b16 %v2149
        %v2322 = vunpack.c.h.b16 %v2149
        %v2323 = vunpack.c.l.b16 %v2150
        %v2324 = vunpack.c.h.b16 %v2150
        %v2325 = vunpack.c.l.b16 %v2151
        %v2326 = vunpack.c.h.b16 %v2151
        %v2327 = vunpack.c.l.b16 %v2152
        %v2328 = vunpack.c.h.b16 %v2152
        %v2329 = vunpack.c.l.b16 %v2153
        %v2330 = vunpack.c.h.b16 %v2153
        %v2331 = vunpack.c.l.b16 %v2154
        %v2332 = vunpack.c.h.b16 %v2154
        %v2333 = vunpack.c.l.b16 %v2155
        %v2334 = vunpack.c.h.b16 %v2155
        %v2335 = vunpack.c.l.b16 %v2156
        %v2336 = vunpack.c.h.b16 %v2156
        %v2337 = vunpack.c.l.b16 %v2157
        %v2338 = vunpack.c.h.b16 %v2157
        %v2339 = vunpack.c.l.b16 %v2158
        %v2340 = vunpack.c.h.b16 %v2158
        %v2341 = vunpack.c.l.b16 %v2159
        %v2342 = vunpack.c.h.b16 %v2159
        %v2343 = vunpack.c.l.b16 %v2160
        %v2344 = vunpack.c.h.b16 %v2160
        %v2345 = vunpack.c.l.b16 %v2161
        %v2346 = vunpack.c.h.b16 %v2161
        %v2347 = vunpack.c.l.b16 %v2162
        %v2348 = vunpack.c.h.b16 %v2162
        %v2349 = vunpack.c.l.b16 %v2163
        %v2350 = vunpack.c.h.b16 %v2163
        %v2351 = vunpack.c.l.b16 %v2164
        %v2352 = vunpack.c.h.b16 %v2164
        %v2353 = vunpack.c.l.b16 %v2165
        %v2354 = vunpack.c.h.b16 %v2165
        %v2355 = vunpack.c.l.b16 %v2166
        %v2356 = vunpack.c.h.b16 %v2166
        %v2357 = vunpack.c.l.b16 %v2167
        %v2358 = vunpack.c.h.b16 %v2167
        %v2359 = vunpack.c.l.b16 %v2168
        %v2360 = vunpack.c.h.b16 %v2168
        %v2361 = vunpack.c.l.b16 %v2169
        %v2362 = vunpack.c.h.b16 %v2169
        %v2363 = vunpack.c.l.b16 %v2170
        %v2364 = vunpack.c.h.b16 %v2170
        %v2365 = vunpack.c.l.b16 %v2171
        %v2366 = vunpack.c.h.b16 %v2171
        %v2367 = vunpack.c.l.b16 %v2172
        %v2368 = vunpack.c.h.b16 %v2172
        %v2369 = vunpack.c.l.b16 %v2173
        %v2370 = vunpack.c.h.b16 %v2173
        %v2371 = vunpack.c.l.b16 %v2174
        %v2372 = vunpack.c.h.b16 %v2174
        %v2373 = vunpack.c.l.b16 %v2175
        %v2374 = vunpack.c.h.b16 %v2175
        %v2375 = vunpack.c.l.b16 %v2176
        %v2376 = vunpack.c.h.b16 %v2176
        %v2377 = vunpack.c.l.b16 %v2177
        %v2378 = vunpack.c.h.b16 %v2177
        %v2379 = vunpack.c.l.b16 %v2178
        %v2380 = vunpack.c.h.b16 %v2178
        %v2381 = vunpack.c.l.b16 %v2179
        %v2382 = vunpack.c.h.b16 %v2179
        %v2383 = vunpack.c.l.b16 %v2180
        %v2384 = vunpack.c.h.b16 %v2180
        %v2385 = vpack.c.b16 %v2259, %v2257
        %v2386 = vpack.c.b16 %v2260, %v2258
        %v2387 = vpack.c.b16 %v2263, %v2261
        %v2388 = vpack.c.b16 %v2264, %v2262
        %v2389 = vpack.c.b16 %v2267, %v2265
        %v2390 = vpack.c.b16 %v2268, %v2266
        %v2391 = vpack.c.b16 %v2271, %v2269
        %v2392 = vpack.c.b16 %v2272, %v2270
        %v2393 = vpack.c.b16 %v2275, %v2273
        %v2394 = vpack.c.b16 %v2276, %v2274
        %v2395 = vpack.c.b16 %v2279, %v2277
        %v2396 = vpack.c.b16 %v2280, %v2278
        %v2397 = vpack.c.b16 %v2283, %v2281
        %v2398 = vpack.c.b16 %v2284, %v2282
        %v2399 = vpack.c.b16 %v2287, %v2285
        %v2400 = vpack.c.b16 %v2288, %v2286
        %v2401 = vpack.c.b16 %v2291, %v2289
        %v2402 = vpack.c.b16 %v2292, %v2290
        %v2403 = vpack.c.b16 %v2295, %v2293
        %v2404 = vpack.c.b16 %v2296, %v2294
        %v2405 = vpack.c.b16 %v2299, %v2297
        %v2406 = vpack.c.b16 %v2300, %v2298
        %v2407 = vpack.c.b16 %v2303, %v2301
        %v2408 = vpack.c.b16 %v2304, %v2302
        %v2409 = vpack.c.b16 %v2307, %v2305
        %v2410 = vpack.c.b16 %v2308, %v2306
        %v2411 = vpack.c.b16 %v2311, %v2309
        %v2412 = vpack.c.b16 %v2312, %v2310
        %v2413 = vpack.c.b16 %v2315, %v2313
        %v2414 = vpack.c.b16 %v2316, %v2314
        %v2415 = vpack.c.b16 %v2319, %v2317
        %v2416 = vpack.c.b16 %v2320, %v2318
        %v2417 = vpack.c.b16 %v2323, %v2321
        %v2418 = vpack.c.b16 %v2324, %v2322
        %v2419 = vpack.c.b16 %v2327, %v2325
        %v2420 = vpack.c.b16 %v2328, %v2326
        %v2421 = vpack.c.b16 %v2331, %v2329
        %v2422 = vpack.c.b16 %v2332, %v2330
        %v2423 = vpack.c.b16 %v2335, %v2333
        %v2424 = vpack.c.b16 %v2336, %v2334
        %v2425 = vpack.c.b16 %v2339, %v2337
        %v2426 = vpack.c.b16 %v2340, %v2338
        %v2427 = vpack.c.b16 %v2343, %v2341
        %v2428 = vpack.c.b16 %v2344, %v2342
        %v2429 = vpack.c.b16 %v2347, %v2345
        %v2430 = vpack.c.b16 %v2348, %v2346
        %v2431 = vpack.c.b16 %v2351, %v2349
        %v2432 = vpack.c.b16 %v2352, %v2350
        %v2433 = vpack.c.b16 %v2355, %v2353
        %v2434 = vpack.c.b16 %v2356, %v2354
        %v2435 = vpack.c.b16 %v2359, %v2357
        %v2436 = vpack.c.b16 %v2360, %v2358
        %v2437 = vpack.c.b16 %v2363, %v2361
        %v2438 = vpack.c.b16 %v2364, %v2362
        %v2439 = vpack.c.b16 %v2367, %v2365
        %v2440 = vpack.c.b16 %v2368, %v2366
        %v2441 = vpack.c.b16 %v2371, %v2369
        %v2442 = vpack.c.b16 %v2372, %v2370
        %v2443 = vpack.c.b16 %v2375, %v2373
        %v2444 = vpack.c.b16 %v2376, %v2374
        %v2445 = vpack.c.b16 %v2379, %v2377
        %v2446 = vpack.c.b16 %v2380, %v2378
        %v2447 = vpack.c.b16 %v2383, %v2381
        %v2448 = vpack.c.b16 %v2384, %v2382
        %2513 = vmatprep.subr.bf16.mxu0 %v2400
        %2514 = vmatpush1.bf16.msra.mxu0 %v2399
        %2515 = vmatprep.subr.bf16.mxu0 %v2398
        %2516 = vmatpush1.bf16.msra.mxu0 %v2397
        %2517 = vmatprep.subr.bf16.mxu0 %v2396
        %2518 = vmatpush1.bf16.msra.mxu0 %v2395
        %2519 = vmatprep.subr.bf16.mxu0 %v2394
        %2520 = vmatpush1.bf16.msra.mxu0 %v2393
        %2521 = vmatprep.subr.bf16.mxu0 %v2392
        %2522 = vmatpush1.bf16.msra.mxu0 %v2391
        %2523 = vmatprep.subr.bf16.mxu0 %v2390
        %2524 = vmatpush1.bf16.msra.mxu0 %v2389
        %2525 = vmatprep.subr.bf16.mxu0 %v2388
        %2526 = vmatpush1.bf16.msra.mxu0 %v2387
        %2527 = vmatprep.subr.bf16.mxu0 %v2386
        %2528 = vmatpush1.bf16.msra.mxu0 %v2385
        %2529 = vmatprep.subr.bf16.mxu0 %v2416
        %2530 = vmatpush2.bf16.msra.mxu0 %v2415
        %2531 = vmatprep.subr.bf16.mxu0 %v2414
        %2532 = vmatpush2.bf16.msra.mxu0 %v2413
        %2533 = vmatprep.subr.bf16.mxu0 %v2412
        %2534 = vmatpush2.bf16.msra.mxu0 %v2411
        %2535 = vmatprep.subr.bf16.mxu0 %v2410
        %2536 = vmatpush2.bf16.msra.mxu0 %v2409
        %2537 = vmatprep.subr.bf16.mxu0 %v2408
        %2538 = vmatpush2.bf16.msra.mxu0 %v2407
        %2539 = vmatprep.subr.bf16.mxu0 %v2406
        %2540 = vmatpush2.bf16.msra.mxu0 %v2405
        %2541 = vmatprep.subr.bf16.mxu0 %v2404
        %2542 = vmatpush2.bf16.msra.mxu0 %v2403
        %2543 = vmatprep.subr.bf16.mxu0 %v2402
        %2544 = vmatpush2.bf16.msra.mxu0 %v2401
        %2545 = vmatprep.mubr.bf16.mxu0 %v2090
        %2546 = vmatmul.mubr.bf16.gmra.mxu0 %v2089
        %v2547 = vpop.f32.mrf.mxu0
        %v2548 = vadd.f32 %v2186, %v2547
        %v2549 = vpop.f32.mrf.mxu0
        %v2550 = vadd.f32 %v2190, %v2549
        %v2551 = vpop.f32.mrf.mxu0
        %v2552 = vadd.f32 %v2186, %v2551
        %v2553 = vpop.f32.mrf.mxu0
        %v2554 = vadd.f32 %v2190, %v2553
        %2555 = vmatprep.mubr.bf16.mxu0 %v2094
        %2556 = vmatmul.mubr.bf16.gmra.mxu0 %v2093
        %v2557 = vpop.f32.mrf.mxu0
        %v2558 = vadd.f32 %v2186, %v2557
        %v2559 = vpop.f32.mrf.mxu0
        %v2560 = vadd.f32 %v2190, %v2559
        %v2561 = vpop.f32.mrf.mxu0
        %v2562 = vadd.f32 %v2186, %v2561
        %v2563 = vpop.f32.mrf.mxu0
        %v2564 = vadd.f32 %v2190, %v2563
        %2565 = vmatprep.mubr.bf16.mxu0 %v2098
        %2566 = vmatmul.mubr.bf16.gmra.mxu0 %v2097
        %v2567 = vpop.f32.mrf.mxu0
        %v2568 = vadd.f32 %v2186, %v2567
        %v2569 = vpop.f32.mrf.mxu0
        %v2570 = vadd.f32 %v2190, %v2569
        %v2571 = vpop.f32.mrf.mxu0
        %v2572 = vadd.f32 %v2186, %v2571
        %v2573 = vpop.f32.mrf.mxu0
        %v2574 = vadd.f32 %v2190, %v2573
        %2575 = vmatprep.mubr.bf16.mxu0 %v2102
        %2576 = vmatmul.mubr.bf16.gmra.mxu0 %v2101
        %v2577 = vpop.f32.mrf.mxu0
        %v2578 = vadd.f32 %v2186, %v2577
        %v2579 = vpop.f32.mrf.mxu0
        %v2580 = vadd.f32 %v2190, %v2579
        %v2581 = vpop.f32.mrf.mxu0
        %v2582 = vadd.f32 %v2186, %v2581
        %v2583 = vpop.f32.mrf.mxu0
        %v2584 = vadd.f32 %v2190, %v2583
        %2585 = vmatprep.mubr.bf16.mxu0 %v2106
        %2586 = vmatmul.mubr.bf16.gmra.mxu0 %v2105
        %v2587 = vpop.f32.mrf.mxu0
        %v2588 = vadd.f32 %v2186, %v2587
        %v2589 = vpop.f32.mrf.mxu0
        %v2590 = vadd.f32 %v2190, %v2589
        %v2591 = vpop.f32.mrf.mxu0
        %v2592 = vadd.f32 %v2186, %v2591
        %v2593 = vpop.f32.mrf.mxu0
        %v2594 = vadd.f32 %v2190, %v2593
        %2595 = vmatprep.mubr.bf16.mxu0 %v2110
        %2596 = vmatmul.mubr.bf16.gmra.mxu0 %v2109
        %v2597 = vpop.f32.mrf.mxu0
        %v2598 = vadd.f32 %v2186, %v2597
        %v2599 = vpop.f32.mrf.mxu0
        %v2600 = vadd.f32 %v2190, %v2599
        %v2601 = vpop.f32.mrf.mxu0
        %v2602 = vadd.f32 %v2186, %v2601
        %v2603 = vpop.f32.mrf.mxu0
        %v2604 = vadd.f32 %v2190, %v2603
        %2605 = vmatprep.mubr.bf16.mxu0 %v2114
        %2606 = vmatmul.mubr.bf16.gmra.mxu0 %v2113
        %v2607 = vpop.f32.mrf.mxu0
        %v2608 = vadd.f32 %v2186, %v2607
        %v2609 = vpop.f32.mrf.mxu0
        %v2610 = vadd.f32 %v2190, %v2609
        %v2611 = vpop.f32.mrf.mxu0
        %v2612 = vadd.f32 %v2186, %v2611
        %v2613 = vpop.f32.mrf.mxu0
        %v2614 = vadd.f32 %v2190, %v2613
        %2615 = vdwg.mxu0
        %2616 = vmatprep.subr.bf16.mxu0 %v2432
        %2617 = vmatpush1.bf16.msra.mxu0 %v2431
        %2618 = vmatprep.subr.bf16.mxu0 %v2430
        %2619 = vmatpush1.bf16.msra.mxu0 %v2429
        %2620 = vmatprep.subr.bf16.mxu0 %v2428
        %2621 = vmatpush1.bf16.msra.mxu0 %v2427
        %2622 = vmatprep.subr.bf16.mxu0 %v2426
        %2623 = vmatpush1.bf16.msra.mxu0 %v2425
        %2624 = vmatprep.subr.bf16.mxu0 %v2424
        %2625 = vmatpush1.bf16.msra.mxu0 %v2423
        %2626 = vmatprep.subr.bf16.mxu0 %v2422
        %2627 = vmatpush1.bf16.msra.mxu0 %v2421
        %2628 = vmatprep.subr.bf16.mxu0 %v2420
        %2629 = vmatpush1.bf16.msra.mxu0 %v2419
        %2630 = vmatprep.subr.bf16.mxu0 %v2418
        %2631 = vmatpush1.bf16.msra.mxu0 %v2417
        %2632 = vmatprep.subr.bf16.mxu0 %v2448
        %2633 = vmatpush2.bf16.msra.mxu0 %v2447
        %2634 = vmatprep.subr.bf16.mxu0 %v2446
        %2635 = vmatpush2.bf16.msra.mxu0 %v2445
        %2636 = vmatprep.subr.bf16.mxu0 %v2444
        %2637 = vmatpush2.bf16.msra.mxu0 %v2443
        %2638 = vmatprep.subr.bf16.mxu0 %v2442
        %2639 = vmatpush2.bf16.msra.mxu0 %v2441
        %2640 = vmatprep.subr.bf16.mxu0 %v2440
        %2641 = vmatpush2.bf16.msra.mxu0 %v2439
        %2642 = vmatprep.subr.bf16.mxu0 %v2438
        %2643 = vmatpush2.bf16.msra.mxu0 %v2437
        %2644 = vmatprep.subr.bf16.mxu0 %v2436
        %2645 = vmatpush2.bf16.msra.mxu0 %v2435
        %2646 = vmatprep.subr.bf16.mxu0 %v2434
        %2647 = vmatpush2.bf16.msra.mxu0 %v2433
        %2648 = vmatprep.mubr.bf16.mxu0 %v2092
        %2649 = vmatmul.mubr.bf16.gmra.mxu0 %v2091
        %v2650 = vpop.f32.mrf.mxu0
        %v2651 = vadd.f32 %v2548, %v2650
        %v2652 = vpop.f32.mrf.mxu0
        %v2653 = vadd.f32 %v2550, %v2652
        %v2654 = vpop.f32.mrf.mxu0
        %v2655 = vadd.f32 %v2552, %v2654
        %v2656 = vpop.f32.mrf.mxu0
        %v2657 = vadd.f32 %v2554, %v2656
        %2658 = vmatprep.mubr.bf16.mxu0 %v2096
        %2659 = vmatmul.mubr.bf16.gmra.mxu0 %v2095
        %v2660 = vpop.f32.mrf.mxu0
        %v2661 = vadd.f32 %v2558, %v2660
        %v2662 = vpop.f32.mrf.mxu0
        %v2663 = vadd.f32 %v2560, %v2662
        %v2664 = vpop.f32.mrf.mxu0
        %v2665 = vadd.f32 %v2562, %v2664
        %v2666 = vpop.f32.mrf.mxu0
        %v2667 = vadd.f32 %v2564, %v2666
        %2668 = vmatprep.mubr.bf16.mxu0 %v2100
        %2669 = vmatmul.mubr.bf16.gmra.mxu0 %v2099
        %v2670 = vpop.f32.mrf.mxu0
        %v2671 = vadd.f32 %v2568, %v2670
        %v2672 = vpop.f32.mrf.mxu0
        %v2673 = vadd.f32 %v2570, %v2672
        %v2674 = vpop.f32.mrf.mxu0
        %v2675 = vadd.f32 %v2572, %v2674
        %v2676 = vpop.f32.mrf.mxu0
        %v2677 = vadd.f32 %v2574, %v2676
        %2678 = vmatprep.mubr.bf16.mxu0 %v2104
        %2679 = vmatmul.mubr.bf16.gmra.mxu0 %v2103
        %v2680 = vpop.f32.mrf.mxu0
        %v2681 = vadd.f32 %v2578, %v2680
        %v2682 = vpop.f32.mrf.mxu0
        %v2683 = vadd.f32 %v2580, %v2682
        %v2684 = vpop.f32.mrf.mxu0
        %v2685 = vadd.f32 %v2582, %v2684
        %v2686 = vpop.f32.mrf.mxu0
        %v2687 = vadd.f32 %v2584, %v2686
        %2688 = vmatprep.mubr.bf16.mxu0 %v2108
        %2689 = vmatmul.mubr.bf16.gmra.mxu0 %v2107
        %v2690 = vpop.f32.mrf.mxu0
        %v2691 = vadd.f32 %v2588, %v2690
        %v2692 = vpop.f32.mrf.mxu0
        %v2693 = vadd.f32 %v2590, %v2692
        %v2694 = vpop.f32.mrf.mxu0
        %v2695 = vadd.f32 %v2592, %v2694
        %v2696 = vpop.f32.mrf.mxu0
        %v2697 = vadd.f32 %v2594, %v2696
        %2698 = vmatprep.mubr.bf16.mxu0 %v2112
        %2699 = vmatmul.mubr.bf16.gmra.mxu0 %v2111
        %v2700 = vpop.f32.mrf.mxu0
        %v2701 = vadd.f32 %v2598, %v2700
        %v2702 = vpop.f32.mrf.mxu0
        %v2703 = vadd.f32 %v2600, %v2702
        %v2704 = vpop.f32.mrf.mxu0
        %v2705 = vadd.f32 %v2602, %v2704
        %v2706 = vpop.f32.mrf.mxu0
        %v2707 = vadd.f32 %v2604, %v2706
        %2708 = vmatprep.mubr.bf16.mxu0 %v2116
        %2709 = vmatmul.mubr.bf16.gmra.mxu0 %v2115
        %v2710 = vpop.f32.mrf.mxu0
        %v2711 = vadd.f32 %v2608, %v2710
        %v2712 = vpop.f32.mrf.mxu0
        %v2713 = vadd.f32 %v2610, %v2712
        %v2714 = vpop.f32.mrf.mxu0
        %v2715 = vadd.f32 %v2612, %v2714
        %v2716 = vpop.f32.mrf.mxu0
        %v2717 = vadd.f32 %v2614, %v2716
        %2718 = vdwg.mxu0
        %v2719 = vmul.f32 %v2651, 0.5
        %v2720 = vmul.f32 %v2653, 0.5
        %v2721 = vmul.f32 %v2655, 0.5
        %v2722 = vmul.f32 %v2657, 0.5
        %v2723 = vmul.f32 %v2661, 0.5
        %v2724 = vmul.f32 %v2663, 0.5
        %v2725 = vmul.f32 %v2665, 0.5
        %v2726 = vmul.f32 %v2667, 0.5
        %v2727 = vmul.f32 %v2671, 0.5
        %v2728 = vmul.f32 %v2673, 0.5
        %v2729 = vmul.f32 %v2675, 0.5
        %v2730 = vmul.f32 %v2677, 0.5
        %v2731 = vmul.f32 %v2681, 0.5
        %v2732 = vmul.f32 %v2683, 0.5
        %v2733 = vmul.f32 %v2685, 0.5
        %v2734 = vmul.f32 %v2687, 0.5
        %v2735 = vmul.f32 %v2691, 0.5
        %v2736 = vmul.f32 %v2693, 0.5
        %v2737 = vmul.f32 %v2695, 0.5
        %v2738 = vmul.f32 %v2697, 0.5
        %v2739 = vmul.f32 %v2701, 0.5
        %v2740 = vmul.f32 %v2703, 0.5
        %v2741 = vmul.f32 %v2705, 0.5
        %v2742 = vmul.f32 %v2707, 0.5
        %v2743 = vmul.f32 %v2711, 0.5
        %v2744 = vmul.f32 %v2713, 0.5
        %v2745 = vmul.f32 %v2715, 0.5
        %v2746 = vmul.f32 %v2717, 0.5
        %v2747 = vtanh.pop %v2719
        %v2748 = vtanh.pop %v2720
        %v2749 = vtanh.pop %v2721
        %v2750 = vtanh.pop %v2722
        %v2751 = vtanh.pop %v2723
        %v2752 = vtanh.pop %v2724
        %v2753 = vtanh.pop %v2725
        %v2754 = vtanh.pop %v2726
        %v2755 = vtanh.pop %v2727
        %v2756 = vtanh.pop %v2728
        %v2757 = vtanh.pop %v2729
        %v2758 = vtanh.pop %v2730
        %v2759 = vtanh.pop %v2731
        %v2760 = vtanh.pop %v2732
        %v2761 = vtanh.pop %v2733
        %v2762 = vtanh.pop %v2734
        %v2763 = vtanh.pop %v2735
        %v2764 = vtanh.pop %v2736
        %v2765 = vtanh.pop %v2737
        %v2766 = vtanh.pop %v2738
        %v2767 = vtanh.pop %v2739
        %v2768 = vtanh.pop %v2740
        %v2769 = vtanh.pop %v2741
        %v2770 = vtanh.pop %v2742
        %v2771 = vtanh.pop %v2743
        %v2772 = vtanh.pop %v2744
        %v2773 = vtanh.pop %v2745
        %v2774 = vtanh.pop %v2746
        %v2775 = vadd.f32 %v2747, 1.0
        %v2776 = vadd.f32 %v2748, 1.0
        %v2777 = vadd.f32 %v2749, 1.0
        %v2778 = vadd.f32 %v2750, 1.0
        %v2779 = vadd.f32 %v2751, 1.0
        %v2780 = vadd.f32 %v2752, 1.0
        %v2781 = vadd.f32 %v2753, 1.0
        %v2782 = vadd.f32 %v2754, 1.0
        %v2783 = vadd.f32 %v2755, 1.0
        %v2784 = vadd.f32 %v2756, 1.0
        %v2785 = vadd.f32 %v2757, 1.0
        %v2786 = vadd.f32 %v2758, 1.0
        %v2787 = vadd.f32 %v2759, 1.0
        %v2788 = vadd.f32 %v2760, 1.0
        %v2789 = vadd.f32 %v2761, 1.0
        %v2790 = vadd.f32 %v2762, 1.0
        %v2791 = vadd.f32 %v2763, 1.0
        %v2792 = vadd.f32 %v2764, 1.0
        %v2793 = vadd.f32 %v2765, 1.0
        %v2794 = vadd.f32 %v2766, 1.0
        %v2795 = vadd.f32 %v2767, 1.0
        %v2796 = vadd.f32 %v2768, 1.0
        %v2797 = vadd.f32 %v2769, 1.0
        %v2798 = vadd.f32 %v2770, 1.0
        %v2799 = vadd.f32 %v2771, 1.0
        %v2800 = vadd.f32 %v2772, 1.0
        %v2801 = vadd.f32 %v2773, 1.0
        %v2802 = vadd.f32 %v2774, 1.0
        %v2803 = vmul.f32 %v2775, 0.5
        %v2804 = vmul.f32 %v2776, 0.5
        %v2805 = vmul.f32 %v2777, 0.5
        %v2806 = vmul.f32 %v2778, 0.5
        %v2807 = vmul.f32 %v2779, 0.5
        %v2808 = vmul.f32 %v2780, 0.5
        %v2809 = vmul.f32 %v2781, 0.5
        %v2810 = vmul.f32 %v2782, 0.5
        %v2811 = vmul.f32 %v2783, 0.5
        %v2812 = vmul.f32 %v2784, 0.5
        %v2813 = vmul.f32 %v2785, 0.5
        %v2814 = vmul.f32 %v2786, 0.5
        %v2815 = vmul.f32 %v2787, 0.5
        %v2816 = vmul.f32 %v2788, 0.5
        %v2817 = vmul.f32 %v2789, 0.5
        %v2818 = vmul.f32 %v2790, 0.5
        %v2819 = vmul.f32 %v2791, 0.5
        %v2820 = vmul.f32 %v2792, 0.5
        %v2821 = vmul.f32 %v2793, 0.5
        %v2822 = vmul.f32 %v2794, 0.5
        %v2823 = vmul.f32 %v2795, 0.5
        %v2824 = vmul.f32 %v2796, 0.5
        %v2825 = vmul.f32 %v2797, 0.5
        %v2826 = vmul.f32 %v2798, 0.5
        %v2827 = vmul.f32 %v2799, 0.5
        %v2828 = vmul.f32 %v2800, 0.5
        %v2829 = vmul.f32 %v2801, 0.5
        %v2830 = vmul.f32 %v2802, 0.5
        %2831 = vst [vmem:[%s403] sm:$0xff] %v1592
        %2832 = vst [vmem:[%s403 + $0x8] sm:$0xff] %v1593
        %2833 = vst [vmem:[%s403 + $0x10] sm:$0xff] %v1594
        %2834 = vst [vmem:[%s403 + $0x18] sm:$0xff] %v1595
        %2835 = vst [vmem:[%s403 + $0x20] sm:$0xff] %v1596
        %2836 = vst [vmem:[%s403 + $0x28] sm:$0xff] %v1597
        %2837 = vst [vmem:[%s403 + $0x30] sm:$0xff] %v1598
        %2838 = vst [vmem:[%s403 + $0x38] sm:$0xff] %v1599
        %2839 = vst [vmem:[%s403 + $0x40] sm:$0xff] %v1600
        %2840 = vst [vmem:[%s403 + $0x48] sm:$0xff] %v1601
        %2841 = vst [vmem:[%s403 + $0x50] sm:$0xff] %v1602
        %2842 = vst [vmem:[%s403 + $0x58] sm:$0xff] %v1603
        %2843 = vst [vmem:[%s403 + $0x60] sm:$0xff] %v1604
        %2844 = vst [vmem:[%s403 + $0x68] sm:$0xff] %v1605
        %2845 = vst [vmem:[%s410] sm:$0xff] %v2803
        %2846 = vst [vmem:[%s410 + $0x8] sm:$0xff] %v2804
        %2847 = vst [vmem:[%s410 + $0x10] sm:$0xff] %v2805
        %2848 = vst [vmem:[%s410 + $0x18] sm:$0xff] %v2806
        %2849 = vst [vmem:[%s410 + $0x20] sm:$0xff] %v2807
        %2850 = vst [vmem:[%s410 + $0x28] sm:$0xff] %v2808
        %2851 = vst [vmem:[%s410 + $0x30] sm:$0xff] %v2809
        %2852 = vst [vmem:[%s410 + $0x38] sm:$0xff] %v2810
        %2853 = vst [vmem:[%s410 + $0x40] sm:$0xff] %v2811
        %2854 = vst [vmem:[%s410 + $0x48] sm:$0xff] %v2812
        %2855 = vst [vmem:[%s410 + $0x50] sm:$0xff] %v2813
        %2856 = vst [vmem:[%s410 + $0x58] sm:$0xff] %v2814
        %2857 = vst [vmem:[%s410 + $0x60] sm:$0xff] %v2815
        %2858 = vst [vmem:[%s410 + $0x68] sm:$0xff] %v2816
        %2859 = vst [vmem:[%s410 + $0x70] sm:$0xff] %v2817
        %2860 = vst [vmem:[%s410 + $0x78] sm:$0xff] %v2818
        %2861 = vst [vmem:[%s410 + $0x80] sm:$0xff] %v2819
        %2862 = vst [vmem:[%s410 + $0x88] sm:$0xff] %v2820
        %2863 = vst [vmem:[%s410 + $0x90] sm:$0xff] %v2821
        %2864 = vst [vmem:[%s410 + $0x98] sm:$0xff] %v2822
        %2865 = vst [vmem:[%s410 + $0xa0] sm:$0xff] %v2823
        %2866 = vst [vmem:[%s410 + $0xa8] sm:$0xff] %v2824
        %2867 = vst [vmem:[%s410 + $0xb0] sm:$0xff] %v2825
        %2868 = vst [vmem:[%s410 + $0xb8] sm:$0xff] %v2826
        %2869 = vst [vmem:[%s410 + $0xc0] sm:$0xff] %v2827
        %2870 = vst [vmem:[%s410 + $0xc8] sm:$0xff] %v2828
        %2871 = vst [vmem:[%s410 + $0xd0] sm:$0xff] %v2829
        %2872 = vst [vmem:[%s410 + $0xd8] sm:$0xff] %v2830
        %s2873 = smul.u32 14, %s24
        %p2874 = scmp.lt.s32.totalorder %s2873, 27
        %s2875 = scalar_select %p2874, %s2873, 27
        %s2876 = smul.addr %s2875, 8
        %s2877 = scalar_lea.vmem %s9, %s2876
        %s2878 = smul.u32 14, %s24
        %p2879 = scmp.lt.s32.totalorder %s2878, 27
        %s2880 = scalar_select %p2879, %s2878, 27
        %s2881 = smul.addr %s2880, 2
        %s2882 = smul.addr %s2881, 8
        %s2883 = scalar_lea.vmem %s10, %s2882
        // Predicated region
        $region65: #{autoencoder_forward.1} parent=55 // pred_check
          %p2884 = pneg %p236
        $region66: #{autoencoder_forward.1} parent=55 // pred_check_branch
          %2886 = sbr.rel (%p2884) target = $region68
        $region67: #{autoencoder_forward.1} parent=55 // pred_region
          %s2887 = smul.u32 14, %s24
        $region68: #{autoencoder_forward.1} parent=55 // pred_fallthru
          _
        // Predicated region
        $region69: #{autoencoder_forward.1} parent=55 // pred_check
          %p2888 = pneg %p262
        $region70: #{autoencoder_forward.1} parent=55 // pred_check_branch
          %2890 = sbr.rel (%p2888) target = $region72
        $region71: #{autoencoder_forward.1} parent=55 // pred_region
          %s2891 = smul.u32 14, %s24
        $region72: #{autoencoder_forward.1} parent=55 // pred_fallthru
          _
      $region56: #{autoencoder_forward.1} parent=5 // pred_fallthru
        _
      %p2892 = scmp.le.s32.totalorder 2, %s19
      // Predicated region
      $region73: #{autoencoder_forward.1} parent=5 // pred_check
        %p2893 = pneg %p2892
      $region74: #{autoencoder_forward.1} parent=5 // pred_check_branch
        %2895 = sbr.rel (%p2893) target = $region76
      $region75: #{autoencoder_forward.1} parent=5 // pred_region
        %s2896 = ssub.s32 %s19, 2
        // Predicated region
        $region77: #{autoencoder_forward.1} parent=75 // pred_check
          %p2897 = pneg %p242
        $region78: #{autoencoder_forward.1} parent=75 // pred_check_branch
          %2899 = sbr.rel (%p2897) target = $region80
        $region79: #{autoencoder_forward.1} parent=75 // pred_region
          %s2900 = smul.u32 14, %s25
          %p2901 = scmp.lt.s32.totalorder %s2900, 27
          %s2902 = scalar_select %p2901, %s2900, 27
          %s2903 = smul.addr %s2902, 8
          %s2904 = scalar_lea.vmem %s9, %s2903
        $region80: #{autoencoder_forward.1} parent=75 // pred_fallthru
          _
        // Predicated region
        $region81: #{autoencoder_forward.1} parent=75 // pred_check
          %p2905 = pneg %p268
        $region82: #{autoencoder_forward.1} parent=75 // pred_check_branch
          %2907 = sbr.rel (%p2905) target = $region84
        $region83: #{autoencoder_forward.1} parent=75 // pred_region
          %s2908 = smul.u32 14, %s25
          %p2909 = scmp.lt.s32.totalorder %s2908, 27
          %s2910 = scalar_select %p2909, %s2908, 27
          %s2911 = smul.addr %s2910, 2
          %s2912 = smul.addr %s2911, 8
          %s2913 = scalar_lea.vmem %s10, %s2912
        $region84: #{autoencoder_forward.1} parent=75 // pred_fallthru
          _
      $region76: #{autoencoder_forward.1} parent=5 // pred_fallthru
        _
    $region6: #{autoencoder_forward.1} parent=1 // loop_footer
      %s23 = sadd.s32 1, %s19
    $region7: #{autoencoder_forward.1} parent=1 // loop_footer_branch
      %18 = sbr.rel target = $region3
    $region8: #{autoencoder_forward.1} parent=1 // loop_exit
      _
    %2914 = vsyncpa [#allocation3], 1
    %s2915 = scalar_lea.sflag [#allocation3], 1
    %2916 = vsyncpa %s2915, 1
    %2917 = vsyncpa [#allocation5], 1

</llo_original>
